<compile_context>
chip_gen: v6e
topology: v6e:2x2x1
jax: 0.10.0
libtpu: 0.0.40
codegen_flags: <defaults>
</compile_context>

<pallas_src>
import math

import jax
import jax.numpy as jnp
import numpy as np
from jax.experimental import pallas as pl
from jax.experimental.pallas import tpu as pltpu


# ----------------------------------------------------------------------------
# Shared math helpers (used by BOTH the Pallas kernels and the pure-JAX
# reference).  They only index/slice their `w` / `prm` arguments, so the
# kernels can pass VMEM Refs and the reference can pass plain arrays.
# ----------------------------------------------------------------------------

_BN_EPS = 1e-5
_LOG2 = math.log(2.0)


def _relu(t):
    return jnp.maximum(t, 0.0)


def _softplus(t):
    # numerically stable, purely elementwise (VPU + EUP)
    return jnp.maximum(t, 0.0) + jnp.log(1.0 + jnp.exp(-jnp.abs(t)))


def _gin_mlp(agg, w1, w2, prm):
    """GIN MLP (Linear->ReLU->Linear) followed by the outer ReLU.

    agg: f32 [rows, Din]; w1: bf16 [Din, H]; w2: bf16 [H, H]
    prm: [4, H] = (b1, b2, bn_gamma, bn_beta) -- only b1/b2 used here.
    """
    z = jnp.dot(agg.astype(jnp.bfloat16), w1,
                preferred_element_type=jnp.float32) + prm[0:1, :]
    z = _relu(z)
    z = jnp.dot(z.astype(jnp.bfloat16), w2,
                preferred_element_type=jnp.float32) + prm[1:2, :]
    return _relu(z)


def _bn_affine(z_sum, z_sqsum, gamma, beta, n_rows):
    """Fold training-mode BatchNorm1d (batch stats, biased variance) into a
    per-column affine:  BN(z) = z * scale + shift."""
    mean = z_sum / n_rows
    var = z_sqsum / n_rows - mean * mean
    scale = gamma * jax.lax.rsqrt(var + _BN_EPS)
    shift = beta - mean * scale
    return scale, shift


def _ff(h, w, b):
    """FF block: 3 x (Linear -> ReLU)  +  Linear shortcut.

    h: f32 [rows, E]; w: bf16 [4, E, E] = (l0, l1, l2, shortcut); b: f32 [4, E].
    """
    hb = h.astype(jnp.bfloat16)
    z = _relu(jnp.dot(hb, w[0], preferred_element_type=jnp.float32) + b[0:1, :])
    z = _relu(jnp.dot(z.astype(jnp.bfloat16), w[1],
                      preferred_element_type=jnp.float32) + b[1:2, :])
    z = _relu(jnp.dot(z.astype(jnp.bfloat16), w[2],
                      preferred_element_type=jnp.float32) + b[2:3, :])
    return z + jnp.dot(hb, w[3], preferred_element_type=jnp.float32) + b[3:4, :]


def _jsd_partial_sums(res, pos_mask):
    """Un-normalised JSD positive/negative sums over a [G, nodes] score block.

    Masked-out entries contribute exactly 0 to both sums, so summing a masked
    dense block matches the reference's full [N, G] sums (just transposed)."""
    pmat = res * pos_mask
    qmat = res * (1.0 - pos_mask)
    e_pos = jnp.sum(_LOG2 - _softplus(-pmat), keepdims=True)          # (1, 1)
    e_neg = jnp.sum(_softplus(-qmat) + qmat - _LOG2, keepdims=True)   # (1, 1)
    return e_pos, e_neg


# ----------------------------------------------------------------------------
# Kernel 1: one GIN layer (aggregation + MLP + ReLU + BatchNorm-as-affine)
# ----------------------------------------------------------------------------

def _make_gin_layer_kernel(n_nodes):
    def kernel(klo_ref, khi_ref,                       # scalar prefetch (SMEM)
               adj_ref, h_ref, aff_ref, w1_ref, w2_ref, prm_ref,
               z_ref, aff_out_ref,
               acc_sc, stats_sc):
        i = pl.program_id(0)
        k = pl.program_id(1)
        n_i = pl.num_programs(0)
        n_k = pl.num_programs(1)

        @pl.when(k == 0)
        def _init_acc():
            acc_sc[...] = jnp.zeros_like(acc_sc)

        @pl.when((i == 0) & (k == 0))
        def _init_stats():
            stats_sc[...] = jnp.zeros_like(stats_sc)

        # Skip adjacency tiles that are exactly zero: edges never cross graphs
        # and the +I diagonal always lies inside [klo, khi] for this row tile.
        @pl.when((k >= klo_ref[i]) & (k <= khi_ref[i]))
        def _aggregate():
            # lazily apply the previous layer's BatchNorm affine to the incoming
            # block, cast to bf16 for the MXU, accumulate in f32.
            h_blk = h_ref[...] * aff_ref[0:1, :] + aff_ref[1:2, :]
            acc_sc[...] += jnp.dot(adj_ref[...], h_blk.astype(jnp.bfloat16),
                                   preferred_element_type=jnp.float32)

        @pl.when(k == n_k - 1)
        def _finish_row_tile():
            z = _gin_mlp(acc_sc[...], w1_ref[...], w2_ref[...], prm_ref)
            z_ref[...] = z
            stats_sc[0:1, :] += jnp.sum(z, axis=0, keepdims=True)
            stats_sc[1:2, :] += jnp.sum(z * z, axis=0, keepdims=True)

        @pl.when((i == n_i - 1) & (k == n_k - 1))
        def _finish_layer():
            scale, shift = _bn_affine(stats_sc[0:1, :], stats_sc[1:2, :],
                                      prm_ref[2:3, :], prm_ref[3:4, :], n_nodes)
            aff_out_ref[0:1, :] = scale
            aff_out_ref[1:2, :] = shift

    return kernel


def gin_layer(adj_bf16, h, aff_in, w1, w2, prm, klo, khi, *, tm=128, tk=128):
    n, din = h.shape
    hdim = w1.shape[1]
    assert n % tm == 0 and n % tk == 0
    n_i, n_k = n // tm, n // tk

    def _clamp(k, klo_ref, khi_ref, i):
        return jnp.minimum(jnp.maximum(k, klo_ref[i]), khi_ref[i])

    adj_map = lambda i, k, kl, kh: (i, _clamp(k, kl, kh, i))
    h_map = lambda i, k, kl, kh: (_clamp(k, kl, kh, i), 0)
    const2 = lambda i, k, kl, kh: (0, 0)
    z_map = lambda i, k, kl, kh: (i, 0)

    # explicit VMEM budget: double-buffered blocks + scratch, generous headroom
    block_bytes = 2 * (tm * tk * 2 + tk * din * 4 + 2 * din * 4 +
                       din * hdim * 2 + hdim * hdim * 2 + 4 * hdim * 4 +
                       tm * hdim * 4 + 2 * hdim * 4)
    scratch_bytes = tm * din * 4 + 2 * hdim * 4
    vmem_limit = int(min(64 * 1024 * 1024,                     # v7x-safe cap
                         max(32 * 1024 * 1024,
                             4 * (block_bytes + scratch_bytes))))

    cost = pl.CostEstimate(
        flops=2 * n * n * din + 2 * n * din * hdim + 2 * n * hdim * hdim,
        transcendentals=hdim,                                  # rsqrt in BN fold
        bytes_accessed=n * n * 2 + n * din * 4 + n * hdim * 4 +
                       (din * hdim + hdim * hdim) * 2)

    return pl.pallas_call(
        _make_gin_layer_kernel(n),
        out_shape=(jax.ShapeDtypeStruct((n, hdim), jnp.float32),
                   jax.ShapeDtypeStruct((2, hdim), jnp.float32)),
        grid_spec=pltpu.PrefetchScalarGridSpec(
            num_scalar_prefetch=2,
            grid=(n_i, n_k),
            in_specs=[
                pl.BlockSpec((tm, tk), adj_map),       # adjacency A + I (bf16)
                pl.BlockSpec((tk, din), h_map),        # node features (f32)
                pl.BlockSpec((2, din), const2),        # input BN affine
                pl.BlockSpec((din, hdim), const2),     # w1 (bf16)
                pl.BlockSpec((hdim, hdim), const2),    # w2 (bf16)
                pl.BlockSpec((4, hdim), const2),       # b1, b2, gamma, beta
            ],
            out_specs=[
                pl.BlockSpec((tm, hdim), z_map),       # pre-BN layer output
                pl.BlockSpec((2, hdim), const2),       # BN folded (scale, shift)
            ],
            scratch_shapes=[
                pltpu.VMEM((tm, din), jnp.float32),    # aggregation accumulator
                pltpu.VMEM((2, hdim), jnp.float32),    # BN sum / sum of squares
            ],
        ),
        compiler_params=pltpu.CompilerParams(
            # Cross-row-tile BN statistics live in scratch -> sequential axes.
            dimension_semantics=("arbitrary", "arbitrary"),
            vmem_limit_bytes=vmem_limit,
        ),
        cost_estimate=cost,
    )(klo, khi, adj_bf16, h, aff_in, w1, w2, prm)


# ----------------------------------------------------------------------------
# Kernel 2: pooling + FF(global) + FF(local) + JSD local/global loss
# ----------------------------------------------------------------------------

def _make_head_kernel(num_layers, n_nodes, n_graphs):
    L = num_layers

    def kernel(*refs):
        z_refs = refs[0:L]
        aff_refs = refs[L:2 * L]
        memb_ref, gw_ref, gb_ref, lw_ref, lb_ref = refs[2 * L:2 * L + 5]
        loss_ref = refs[2 * L + 5]
        y_sc, g_sc, epos_sc, eneg_sc = refs[2 * L + 6:2 * L + 10]

        phase = pl.program_id(0)
        i = pl.program_id(1)
        n_i = pl.num_programs(1)

        # BatchNorm'd node embedding tile  M_tile = concat_l BN_l(z_l)  [tm, E].
        # Chunks are 128-lane aligned so the lane-axis concat is layout-clean.
        chunks = []
        for l in range(L):
            a = aff_refs[l]
            chunks.append(z_refs[l][...] * a[0:1, :] + a[1:2, :])
        m_tile = chunks[0] if L == 1 else jnp.concatenate(chunks, axis=1)
        memb_blk = memb_ref[...]                                   # [G, tm] f32

        @pl.when((phase == 0) & (i == 0))
        def _init():
            y_sc[...] = jnp.zeros_like(y_sc)
            epos_sc[...] = jnp.zeros_like(epos_sc)
            eneg_sc[...] = jnp.zeros_like(eneg_sc)

        @pl.when(phase == 0)
        def _pool():
            # global_add_pool: y += memb_blk @ M_tile   [G, E]
            y_sc[...] += jnp.dot(memb_blk.astype(jnp.bfloat16),
                                 m_tile.astype(jnp.bfloat16),
                                 preferred_element_type=jnp.float32)

        @pl.when((phase == 0) & (i == n_i - 1))
        def _global_ff():
            g_sc[...] = _ff(y_sc[...], gw_ref, gb_ref)             # g_enc [G, E]

        @pl.when(phase == 1)
        def _local_scores():
            l_enc = _ff(m_tile, lw_ref, lb_ref)                    # [tm, E]
            # lane-dense scores: graphs on sublanes, nodes on the 128-lane axis
            res = jax.lax.dot_general(
                g_sc[...].astype(jnp.bfloat16), l_enc.astype(jnp.bfloat16),
                dimension_numbers=(((1,), (1,)), ((), ())),
                preferred_element_type=jnp.float32)                # [G, tm]
            e_pos, e_neg = _jsd_partial_sums(res, memb_blk)
            epos_sc[...] += e_pos
            eneg_sc[...] += e_neg

        @pl.when((phase == 1) & (i == n_i - 1))
        def _finalize():
            loss_ref[...] = (eneg_sc[...] / (n_nodes * (n_graphs - 1))
                             - epos_sc[...] / n_nodes)

    return kernel


def head_loss(z_list, aff_list, memb, gw, gb, lw, lb, *, tm=128):
    L = len(z_list)
    n, hdim = z_list[0].shape
    g = memb.shape[0]
    e = gw.shape[1]
    assert e == L * hdim and n % tm == 0
    n_i = n // tm

    row_map = lambda p, i: (i, 0)
    col_map = lambda p, i: (0, i)
    const2 = lambda p, i: (0, 0)
    const3 = lambda p, i: (0, 0, 0)

    in_specs = ([pl.BlockSpec((tm, hdim), row_map) for _ in range(L)] +
                [pl.BlockSpec((2, hdim), const2) for _ in range(L)] +
                [pl.BlockSpec((g, tm), col_map),        # membership / pos mask
                 pl.BlockSpec((4, e, e), const3),       # global_d weights (bf16)
                 pl.BlockSpec((4, e), const2),          # global_d biases
                 pl.BlockSpec((4, e, e), const3),       # local_d weights (bf16)
                 pl.BlockSpec((4, e), const2)])         # local_d biases

    block_bytes = (2 * (L * tm * hdim * 4 + L * 2 * hdim * 4 + g * tm * 4) +
                   2 * (4 * e * e * 2 + 4 * e * 4))
    scratch_bytes = 2 * g * e * 4 + 2 * 4
    vmem_limit = int(min(64 * 1024 * 1024,
                         max(32 * 1024 * 1024,
                             4 * (block_bytes + scratch_bytes))))

    cost = pl.CostEstimate(
        flops=8 * (n + g) * e * e + 4 * g * n * e,
        transcendentals=2 * n * g,                      # exp inside softplus
        bytes_accessed=L * n * hdim * 4 + g * n * 4 + 2 * 4 * e * e * 2)

    return pl.pallas_call(
        _make_head_kernel(L, n, g),
        out_shape=jax.ShapeDtypeStruct((1, 1), jnp.float32),
        grid_spec=pltpu.PrefetchScalarGridSpec(
            num_scalar_prefetch=0,
            grid=(2, n_i),
            in_specs=in_specs,
            out_specs=pl.BlockSpec((1, 1), const2),
            scratch_shapes=[
                pltpu.VMEM((g, e), jnp.float32),        # pooled embeddings y
                pltpu.VMEM((g, e), jnp.float32),        # g_enc
                pltpu.VMEM((1, 1), jnp.float32),        # sum of positive terms
                pltpu.VMEM((1, 1), jnp.float32),        # sum of negative terms
            ],
        ),
        compiler_params=pltpu.CompilerParams(
            # phase 1 needs phase 0's pooled embeddings; loss sums accumulate
            # in scratch -> sequential axes.
            dimension_semantics=("arbitrary", "arbitrary"),
            vmem_limit_bytes=vmem_limit,
        ),
        cost_estimate=cost,
    )(*z_list, *aff_list, memb, gw, gb, lw, lb)


# ----------------------------------------------------------------------------
# Full GcnInfomax forward (Pallas): L GIN-layer calls + 1 head call
# ----------------------------------------------------------------------------

def gcn_infomax_loss(x, adj_bf16, memb, enc_params, gw, gb, lw, lb,
                     klo, khi, *, tm=128, tk=128):
    n, f = x.shape
    h = x
    # identity affine for the raw input features
    aff = jnp.concatenate([jnp.ones((1, f), jnp.float32),
                           jnp.zeros((1, f), jnp.float32)], axis=0)
    zs, affs = [], []
    for (w1, w2, prm) in enc_params:
        z, aff = gin_layer(adj_bf16, h, aff, w1, w2, prm, klo, khi, tm=tm, tk=tk)
        zs.append(z)
        affs.append(aff)
        h = z
    out = head_loss(zs, affs, memb, gw, gb, lw, lb, tm=tm)
    return out[0, 0]
    # TODO(synk): prior branch (torch.rand_like + PriorDiscriminator) is
    #             stochastic; the module is run with prior=False so PRIOR == 0.


# ----------------------------------------------------------------------------
# Pure-JAX reference with identical math (for the correctness check)
# ----------------------------------------------------------------------------

def reference_loss(x, adj_bf16, memb, enc_params, gw, gb, lw, lb):
    n_nodes = x.shape[0]
    n_graphs = memb.shape[0]
    h = x
    scale = jnp.ones((1, x.shape[1]), jnp.float32)
    shift = jnp.zeros((1, x.shape[1]), jnp.float32)
    zs, affs = [], []
    for (w1, w2, prm) in enc_params:
        hin = h * scale + shift
        agg = jnp.dot(adj_bf16, hin.astype(jnp.bfloat16),
                      preferred_element_type=jnp.float32)
        z = _gin_mlp(agg, w1, w2, prm)
        scale, shift = _bn_affine(jnp.sum(z, axis=0, keepdims=True),
                                  jnp.sum(z * z, axis=0, keepdims=True),
                                  prm[2:3, :], prm[3:4, :], n_nodes)
        zs.append(z)
        affs.append((scale, shift))
        h = z
    M = jnp.concatenate([z * s + t for z, (s, t) in zip(zs, affs)], axis=1)
    y = jnp.dot(memb.astype(jnp.bfloat16), M.astype(jnp.bfloat16),
                preferred_element_type=jnp.float32)
    g_enc = _ff(y, gw, gb)
    l_enc = _ff(M, lw, lb)
    res = jax.lax.dot_general(g_enc.astype(jnp.bfloat16),
                              l_enc.astype(jnp.bfloat16),
                              dimension_numbers=(((1,), (1,)), ((), ())),
                              preferred_element_type=jnp.float32)      # [G, N]
    e_pos, e_neg = _jsd_partial_sums(res, memb)
    loss = e_neg / (n_nodes * (n_graphs - 1)) - e_pos / n_nodes
    return loss[0, 0]


# ----------------------------------------------------------------------------
# deterministic setup
# ----------------------------------------------------------------------------

def _xavier_uniform(key, fan_in, fan_out):
    a = math.sqrt(6.0 / (fan_in + fan_out))
    return jax.random.uniform(key, (fan_in, fan_out), jnp.float32, -a, a)


if __name__ == "__main__":
    # Small but lane-dense shapes: 256 nodes, 8 graphs (32 nodes each),
    # 128 input features, hidden=128, 2 GIN layers -> embedding dim E = 256.
    N, F, H, L, G = 256, 128, 128, 2, 8
    TM = TK = 128
    E = H * L
    NPG = N // G

    key = jax.random.PRNGKey(0)
    keys = jax.random.split(key, 16)

    # graph structure: contiguous blocks of NPG nodes per graph, edges only
    # inside a graph; adj_hat = A + I implements GIN aggregation (eps=0)
    batch = jnp.repeat(jnp.arange(G, dtype=jnp.int32), NPG)
    same_graph = batch[:, None] == batch[None, :]
    rand = jax.random.uniform(keys[0], (N, N))
    upper = jnp.triu(((rand > 0.7) & same_graph).astype(jnp.float32), k=1)
    adj_hat = upper + upper.T + jnp.eye(N, dtype=jnp.float32)
    adj_bf16 = adj_hat.astype(jnp.bfloat16)           # 0/1 entries: exact in bf16
    # membership matrix [G, N]: pooling matrix AND (transposed) positive mask
    memb = (batch[None, :] == jnp.arange(G)[:, None]).astype(jnp.float32)
    x = jax.random.normal(keys[1], (N, F), jnp.float32)

    # per-row-tile [klo, khi] neighbour-tile ranges (block-diagonal adjacency)
    batch_np = np.asarray(batch)
    n_row_tiles = N // TM
    klo = np.zeros((n_row_tiles,), np.int32)
    khi = np.zeros((n_row_tiles,), np.int32)
    for t in range(n_row_tiles):
        rows = batch_np[t * TM:(t + 1) * TM]
        lo_nodes = np.nonzero(batch_np == rows.min())[0]
        hi_nodes = np.nonzero(batch_np == rows.max())[0]
        klo[t] = lo_nodes.min() // TK
        khi[t] = hi_nodes.max() // TK
    klo = jnp.asarray(klo)
    khi = jnp.asarray(khi)

    # Encoder parameters: Linear weights xavier_uniform (bf16 for the MXU),
    # biases 0, BN gamma=1, beta=0 -- packed per layer as prm = [b1; b2; gamma; beta]
    ki = 2
    enc_params = []
    in_dim = F
    for _ in range(L):
        w1 = _xavier_uniform(keys[ki], in_dim, H).astype(jnp.bfloat16); ki += 1
        w2 = _xavier_uniform(keys[ki], H, H).astype(jnp.bfloat16); ki += 1
        prm = jnp.concatenate([jnp.zeros((2, H), jnp.float32),
                               jnp.ones((1, H), jnp.float32),
                               jnp.zeros((1, H), jnp.float32)], axis=0)
        enc_params.append((w1, w2, prm))
        in_dim = H

    def make_ff_params(ki):
        ws = []
        for _ in range(4):                    # block l0, l1, l2 + shortcut
            ws.append(_xavier_uniform(keys[ki], E, E)); ki += 1
        w = jnp.stack(ws, axis=0).astype(jnp.bfloat16)     # [4, E, E]
        b = jnp.zeros((4, E), jnp.float32)                 # [4, E]
        return w, b, ki

    gw, gb, ki = make_ff_params(ki)           # global_d
    lw, lb, ki = make_ff_params(ki)           # local_d

    # --- run Pallas kernels ---
    loss = gcn_infomax_loss(x, adj_bf16, memb, enc_params, gw, gb, lw, lb,
                            klo, khi, tm=TM, tk=TK)
    loss = jax.block_until_ready(loss)

    # --- pure-JAX reference with identical math ---
    ref = reference_loss(x, adj_bf16, memb, enc_params, gw, gb, lw, lb)
    ref = jax.block_until_ready(ref)

    np.testing.assert_allclose(np.asarray(loss), np.asarray(ref),
                               rtol=2e-3, atol=2e-3)
    print("KERNEL_OK")
</pallas_src>

<mosaic_0001>
module attributes {stable_mosaic.version = 11 : i64} {
  func.func @kernel(%arg0: i32, %arg1: i32, %arg2: memref<2xi32, #tpu.memory_space<smem>>, %arg3: memref<2xi32, #tpu.memory_space<smem>>, %arg4: memref<128x128xbf16, #tpu.memory_space<vmem>>, %arg5: memref<128x128xf32, #tpu.memory_space<vmem>>, %arg6: memref<2x128xf32, #tpu.memory_space<vmem>>, %arg7: memref<128x128xbf16, #tpu.memory_space<vmem>>, %arg8: memref<128x128xbf16, #tpu.memory_space<vmem>>, %arg9: memref<4x128xf32, #tpu.memory_space<vmem>>, %arg10: memref<128x128xf32, #tpu.memory_space<vmem>>, %arg11: memref<2x128xf32, #tpu.memory_space<vmem>>, %arg12: memref<128x128xf32, #tpu.memory_space<vmem>>, %arg13: memref<2x128xf32, #tpu.memory_space<vmem>>) attributes {dimension_semantics = [#tpu.dimension_semantics<arbitrary>, #tpu.dimension_semantics<arbitrary>], iteration_bounds = array<i64: 2, 2>, scalar_prefetch = 2 : i64, scratch_operands = 2 : i64, tpu.core_type = #tpu.core_type<tc>, window_params = [{transform_indices = @transform_0, window_bounds = array<i64: 128, 128>}, {transform_indices = @transform_1, window_bounds = array<i64: 128, 128>}, {pipeline_mode = #tpu.pipeline_mode<synchronous>, transform_indices = @transform_2, window_bounds = array<i64: 2, 128>}, {pipeline_mode = #tpu.pipeline_mode<synchronous>, transform_indices = @transform_3, window_bounds = array<i64: 128, 128>}, {pipeline_mode = #tpu.pipeline_mode<synchronous>, transform_indices = @transform_4, window_bounds = array<i64: 128, 128>}, {pipeline_mode = #tpu.pipeline_mode<synchronous>, transform_indices = @transform_5, window_bounds = array<i64: 4, 128>}, {transform_indices = @transform_6, window_bounds = array<i64: 128, 128>}, {pipeline_mode = #tpu.pipeline_mode<synchronous>, transform_indices = @transform_7, window_bounds = array<i64: 2, 128>}]} {
    %c0_i32 = arith.constant 0 : i32
    %0 = arith.cmpi eq, %arg1, %c0_i32 : i32
    %1 = arith.extui %0 : i1 to i32
    %c0_i32_0 = arith.constant 0 : i32
    %2 = arith.cmpi ne, %1, %c0_i32_0 : i32
    scf.if %2 {
      %cst = arith.constant 0.000000e+00 : f32
      %25 = vector.broadcast %cst : f32 to vector<128x128xf32>
      %c0 = arith.constant 0 : index
      %c0_9 = arith.constant 0 : index
      %26 = vector.load %arg12[%c0, %c0_9] : memref<128x128xf32, #tpu.memory_space<vmem>>, vector<128x128xf32>
      tpu.vector_store %arg12[%c0, %c0_9], %25 {strides = array<i32>} : memref<128x128xf32, #tpu.memory_space<vmem>>, vector<128x128xf32>,
    } else {
    }
    %c0_i32_1 = arith.constant 0 : i32
    %3 = arith.cmpi eq, %arg0, %c0_i32_1 : i32
    %c0_i32_2 = arith.constant 0 : i32
    %4 = arith.cmpi eq, %arg1, %c0_i32_2 : i32
    %5 = arith.andi %3, %4 : i1
    %6 = arith.extui %5 : i1 to i32
    %c0_i32_3 = arith.constant 0 : i32
    %7 = arith.cmpi ne, %6, %c0_i32_3 : i32
    scf.if %7 {
      %cst = arith.constant 0.000000e+00 : f32
      %25 = vector.broadcast %cst : f32 to vector<2x128xf32>
      %c0 = arith.constant 0 : index
      %c0_9 = arith.constant 0 : index
      %26 = vector.load %arg13[%c0, %c0_9] : memref<2x128xf32, #tpu.memory_space<vmem>>, vector<2x128xf32>
      tpu.vector_store %arg13[%c0, %c0_9], %25 {strides = array<i32>} : memref<2x128xf32, #tpu.memory_space<vmem>>, vector<2x128xf32>,
    } else {
    }
    %8 = arith.index_cast %arg0 : i32 to index
    %9 = memref.load %arg2[%8] : memref<2xi32, #tpu.memory_space<smem>>
    %10 = arith.cmpi sge, %arg1, %9 : i32
    %11 = arith.index_cast %arg0 : i32 to index
    %12 = memref.load %arg3[%11] : memref<2xi32, #tpu.memory_space<smem>>
    %13 = arith.cmpi sle, %arg1, %12 : i32
    %14 = arith.andi %10, %13 : i1
    %15 = arith.extui %14 : i1 to i32
    %c0_i32_4 = arith.constant 0 : i32
    %16 = arith.cmpi ne, %15, %c0_i32_4 : i32
    scf.if %16 {
      %c0 = arith.constant 0 : index
      %c0_9 = arith.constant 0 : index
      %25 = vector.load %arg5[%c0, %c0_9] : memref<128x128xf32, #tpu.memory_space<vmem>>, vector<128x128xf32>
      %c0_10 = arith.constant 0 : index
      %c0_11 = arith.constant 0 : index
      %26 = vector.load %arg6[%c0_10, %c0_11] : memref<2x128xf32, #tpu.memory_space<vmem>>, vector<1x128xf32>
      %27 = vector.broadcast %26 : vector<1x128xf32> to vector<128x128xf32>
      %28 = arith.mulf %25, %27 : vector<128x128xf32>
      %c1 = arith.constant 1 : index
      %c0_12 = arith.constant 0 : index
      %29 = vector.load %arg6[%c1, %c0_12] : memref<2x128xf32, #tpu.memory_space<vmem>>, vector<1x128xf32>
      %30 = vector.broadcast %29 : vector<1x128xf32> to vector<128x128xf32>
      %31 = arith.addf %28, %30 : vector<128x128xf32>
      %c0_13 = arith.constant 0 : index
      %c0_14 = arith.constant 0 : index
      %32 = vector.load %arg12[%c0_13, %c0_14] : memref<128x128xf32, #tpu.memory_space<vmem>>, vector<128x128xf32>
      %c0_15 = arith.constant 0 : index
      %c0_16 = arith.constant 0 : index
      %33 = vector.load %arg4[%c0_15, %c0_16] : memref<128x128xbf16, #tpu.memory_space<vmem>>, vector<128x128xbf16>
      %34 = arith.truncf %31 : vector<128x128xf32> to vector<128x128xbf16>
      %cst = arith.constant dense<0.000000e+00> : vector<128x128xf32>
      %35 = tpu.matmul %33, %34, %cst {dimension_numbers = #tpu.dot_dimension_numbers<[1], [0], [0], [1], [0, 0, 1, 1], [], []>} : vector<128x128xbf16>, vector<128x128xbf16>, vector<128x128xf32> -> vector<128x128xf32>
      %36 = arith.addf %32, %35 : vector<128x128xf32>
      %c0_17 = arith.constant 0 : index
      %c0_18 = arith.constant 0 : index
      %37 = vector.load %arg12[%c0_17, %c0_18] : memref<128x128xf32, #tpu.memory_space<vmem>>, vector<128x128xf32>
      tpu.vector_store %arg12[%c0_17, %c0_18], %36 {strides = array<i32>} : memref<128x128xf32, #tpu.memory_space<vmem>>, vector<128x128xf32>,
    } else {
    }
    %c1_i32 = arith.constant 1 : i32
    %17 = arith.cmpi eq, %arg1, %c1_i32 : i32
    %18 = arith.extui %17 : i1 to i32
    %c0_i32_5 = arith.constant 0 : i32
    %19 = arith.cmpi ne, %18, %c0_i32_5 : i32
    scf.if %19 {
      %c0 = arith.constant 0 : index
      %c0_9 = arith.constant 0 : index
      %25 = vector.load %arg12[%c0, %c0_9] : memref<128x128xf32, #tpu.memory_space<vmem>>, vector<128x128xf32>
      %c0_10 = arith.constant 0 : index
      %c0_11 = arith.constant 0 : index
      %26 = vector.load %arg7[%c0_10, %c0_11] : memref<128x128xbf16, #tpu.memory_space<vmem>>, vector<128x128xbf16>
      %c0_12 = arith.constant 0 : index
      %c0_13 = arith.constant 0 : index
      %27 = vector.load %arg8[%c0_12, %c0_13] : memref<128x128xbf16, #tpu.memory_space<vmem>>, vector<128x128xbf16>
      %28 = arith.truncf %25 : vector<128x128xf32> to vector<128x128xbf16>
      %cst = arith.constant dense<0.000000e+00> : vector<128x128xf32>
      %29 = tpu.matmul %28, %26, %cst {dimension_numbers = #tpu.dot_dimension_numbers<[1], [0], [0], [1], [0, 0, 1, 1], [], []>} : vector<128x128xbf16>, vector<128x128xbf16>, vector<128x128xf32> -> vector<128x128xf32>
      %c0_14 = arith.constant 0 : index
      %c0_15 = arith.constant 0 : index
      %30 = vector.load %arg9[%c0_14, %c0_15] : memref<4x128xf32, #tpu.memory_space<vmem>>, vector<1x128xf32>
      %31 = vector.broadcast %30 : vector<1x128xf32> to vector<128x128xf32>
      %32 = arith.addf %29, %31 : vector<128x128xf32>
      %cst_16 = arith.constant 0.000000e+00 : f32
      %33 = vector.broadcast %cst_16 : f32 to vector<128x128xf32>
      %34 = arith.maximumf %32, %33 : vector<128x128xf32>
      %35 = arith.truncf %34 : vector<128x128xf32> to vector<128x128xbf16>
      %cst_17 = arith.constant dense<0.000000e+00> : vector<128x128xf32>
      %36 = tpu.matmul %35, %27, %cst_17 {dimension_numbers = #tpu.dot_dimension_numbers<[1], [0], [0], [1], [0, 0, 1, 1], [], []>} : vector<128x128xbf16>, vector<128x128xbf16>, vector<128x128xf32> -> vector<128x128xf32>
      %c1 = arith.constant 1 : index
      %c0_18 = arith.constant 0 : index
      %37 = vector.load %arg9[%c1, %c0_18] : memref<4x128xf32, #tpu.memory_space<vmem>>, vector<1x128xf32>
      %38 = vector.broadcast %37 : vector<1x128xf32> to vector<128x128xf32>
      %39 = arith.addf %36, %38 : vector<128x128xf32>
      %cst_19 = arith.constant 0.000000e+00 : f32
      %40 = vector.broadcast %cst_19 : f32 to vector<128x128xf32>
      %41 = arith.maximumf %39, %40 : vector<128x128xf32>
      %c0_20 = arith.constant 0 : index
      %c0_21 = arith.constant 0 : index
      %42 = vector.load %arg10[%c0_20, %c0_21] : memref<128x128xf32, #tpu.memory_space<vmem>>, vector<128x128xf32>
      tpu.vector_store %arg10[%c0_20, %c0_21], %41 {strides = array<i32>} : memref<128x128xf32, #tpu.memory_space<vmem>>, vector<128x128xf32>,
      %c0_22 = arith.constant 0 : index
      %c0_23 = arith.constant 0 : index
      %43 = vector.load %arg13[%c0_22, %c0_23] : memref<2x128xf32, #tpu.memory_space<vmem>>, vector<1x128xf32>
      %cst_24 = arith.constant dense<0.000000e+00> : vector<128xf32>
      %44 = vector.multi_reduction <add>, %41, %cst_24 [0] : vector<128x128xf32> to vector<128xf32>
      %45 = vector.shape_cast %44 : vector<128xf32> to vector<1x128xf32>
      %46 = arith.addf %43, %45 : vector<1x128xf32>
      %c0_25 = arith.constant 0 : index
      %c0_26 = arith.constant 0 : index
      %47 = vector.load %arg13[%c0_25, %c0_26] : memref<2x128xf32, #tpu.memory_space<vmem>>, vector<1x128xf32>
      tpu.vector_store %arg13[%c0_25, %c0_26], %46 {strides = array<i32>} : memref<2x128xf32, #tpu.memory_space<vmem>>, vector<1x128xf32>,
      %c1_27 = arith.constant 1 : index
      %c0_28 = arith.constant 0 : index
      %48 = vector.load %arg13[%c1_27, %c0_28] : memref<2x128xf32, #tpu.memory_space<vmem>>, vector<1x128xf32>
      %49 = arith.mulf %41, %41 : vector<128x128xf32>
      %cst_29 = arith.constant dense<0.000000e+00> : vector<128xf32>
      %50 = vector.multi_reduction <add>, %49, %cst_29 [0] : vector<128x128xf32> to vector<128xf32>
      %51 = vector.shape_cast %50 : vector<128xf32> to vector<1x128xf32>
      %52 = arith.addf %48, %51 : vector<1x128xf32>
      %c1_30 = arith.constant 1 : index
      %c0_31 = arith.constant 0 : index
      %53 = vector.load %arg13[%c1_30, %c0_31] : memref<2x128xf32, #tpu.memory_space<vmem>>, vector<1x128xf32>
      tpu.vector_store %arg13[%c1_30, %c0_31], %52 {strides = array<i32>} : memref<2x128xf32, #tpu.memory_space<vmem>>, vector<1x128xf32>,
    } else {
    }
    %c1_i32_6 = arith.constant 1 : i32
    %20 = arith.cmpi eq, %arg0, %c1_i32_6 : i32
    %c1_i32_7 = arith.constant 1 : i32
    %21 = arith.cmpi eq, %arg1, %c1_i32_7 : i32
    %22 = arith.andi %20, %21 : i1
    %23 = arith.extui %22 : i1 to i32
    %c0_i32_8 = arith.constant 0 : i32
    %24 = arith.cmpi ne, %23, %c0_i32_8 : i32
    scf.if %24 {
      %c0 = arith.constant 0 : index
      %c0_9 = arith.constant 0 : index
      %25 = vector.load %arg13[%c0, %c0_9] : memref<2x128xf32, #tpu.memory_space<vmem>>, vector<1x128xf32>
      %c1 = arith.constant 1 : index
      %c0_10 = arith.constant 0 : index
      %26 = vector.load %arg13[%c1, %c0_10] : memref<2x128xf32, #tpu.memory_space<vmem>>, vector<1x128xf32>
      %c2 = arith.constant 2 : index
      %c0_11 = arith.constant 0 : index
      %27 = vector.load %arg9[%c2, %c0_11] : memref<4x128xf32, #tpu.memory_space<vmem>>, vector<1x128xf32>
      %c3 = arith.constant 3 : index
      %c0_12 = arith.constant 0 : index
      %28 = vector.load %arg9[%c3, %c0_12] : memref<4x128xf32, #tpu.memory_space<vmem>>, vector<1x128xf32>
      %cst = arith.constant 2.560000e+02 : f32
      %29 = vector.broadcast %cst : f32 to vector<1x128xf32>
      %30 = arith.divf %25, %29 : vector<1x128xf32>
      %cst_13 = arith.constant 2.560000e+02 : f32
      %31 = vector.broadcast %cst_13 : f32 to vector<1x128xf32>
      %32 = arith.divf %26, %31 : vector<1x128xf32>
      %33 = arith.mulf %30, %30 : vector<1x128xf32>
      %34 = arith.subf %32, %33 : vector<1x128xf32>
      %cst_14 = arith.constant 9.99999974E-6 : f32
      %35 = vector.broadcast %cst_14 : f32 to vector<1x128xf32>
      %36 = arith.addf %34, %35 : vector<1x128xf32>
      %37 = math.rsqrt %36 : vector<1x128xf32>
      %38 = arith.mulf %27, %37 : vector<1x128xf32>
      %39 = arith.mulf %30, %38 : vector<1x128xf32>
      %40 = arith.subf %28, %39 : vector<1x128xf32>
      %c0_15 = arith.constant 0 : index
      %c0_16 = arith.constant 0 : index
      %41 = vector.load %arg11[%c0_15, %c0_16] : memref<2x128xf32, #tpu.memory_space<vmem>>, vector<1x128xf32>
      tpu.vector_store %arg11[%c0_15, %c0_16], %38 {strides = array<i32>} : memref<2x128xf32, #tpu.memory_space<vmem>>, vector<1x128xf32>,
      %c1_17 = arith.constant 1 : index
      %c0_18 = arith.constant 0 : index
      %42 = vector.load %arg11[%c1_17, %c0_18] : memref<2x128xf32, #tpu.memory_space<vmem>>, vector<1x128xf32>
      tpu.vector_store %arg11[%c1_17, %c0_18], %40 {strides = array<i32>} : memref<2x128xf32, #tpu.memory_space<vmem>>, vector<1x128xf32>,
    } else {
    }
    return
  }
  func.func @transform_0(%arg0: i32, %arg1: i32, %arg2: memref<2xi32, #tpu.memory_space<smem>>, %arg3: memref<2xi32, #tpu.memory_space<smem>>) -> (i32, i32) {
    %0 = arith.index_cast %arg0 : i32 to index
    %1 = memref.load %arg2[%0] : memref<2xi32, #tpu.memory_space<smem>>
    %2 = arith.maxsi %arg1, %1 : i32
    %3 = arith.index_cast %arg0 : i32 to index
    %4 = memref.load %arg3[%3] : memref<2xi32, #tpu.memory_space<smem>>
    %5 = arith.minsi %2, %4 : i32
    %c0_i32 = arith.constant 0 : i32
    return %arg0, %5 : i32, i32
  }
  func.func @transform_1(%arg0: i32, %arg1: i32, %arg2: memref<2xi32, #tpu.memory_space<smem>>, %arg3: memref<2xi32, #tpu.memory_space<smem>>) -> (i32, i32) {
    %0 = arith.index_cast %arg0 : i32 to index
    %1 = memref.load %arg2[%0] : memref<2xi32, #tpu.memory_space<smem>>
    %2 = arith.maxsi %arg1, %1 : i32
    %3 = arith.index_cast %arg0 : i32 to index
    %4 = memref.load %arg3[%3] : memref<2xi32, #tpu.memory_space<smem>>
    %5 = arith.minsi %2, %4 : i32
    %c0_i32 = arith.constant 0 : i32
    %c0_i32_0 = arith.constant 0 : i32
    return %5, %c0_i32 : i32, i32
  }
  func.func @transform_2(%arg0: i32, %arg1: i32, %arg2: memref<2xi32, #tpu.memory_space<smem>>, %arg3: memref<2xi32, #tpu.memory_space<smem>>) -> (i32, i32) {
    %c0_i32 = arith.constant 0 : i32
    %c0_i32_0 = arith.constant 0 : i32
    %c0_i32_1 = arith.constant 0 : i32
    return %c0_i32, %c0_i32_0 : i32, i32
  }
  func.func @transform_3(%arg0: i32, %arg1: i32, %arg2: memref<2xi32, #tpu.memory_space<smem>>, %arg3: memref<2xi32, #tpu.memory_space<smem>>) -> (i32, i32) {
    %c0_i32 = arith.constant 0 : i32
    %c0_i32_0 = arith.constant 0 : i32
    %c0_i32_1 = arith.constant 0 : i32
    return %c0_i32, %c0_i32_0 : i32, i32
  }
  func.func @transform_4(%arg0: i32, %arg1: i32, %arg2: memref<2xi32, #tpu.memory_space<smem>>, %arg3: memref<2xi32, #tpu.memory_space<smem>>) -> (i32, i32) {
    %c0_i32 = arith.constant 0 : i32
    %c0_i32_0 = arith.constant 0 : i32
    %c0_i32_1 = arith.constant 0 : i32
    return %c0_i32, %c0_i32_0 : i32, i32
  }
  func.func @transform_5(%arg0: i32, %arg1: i32, %arg2: memref<2xi32, #tpu.memory_space<smem>>, %arg3: memref<2xi32, #tpu.memory_space<smem>>) -> (i32, i32) {
    %c0_i32 = arith.constant 0 : i32
    %c0_i32_0 = arith.constant 0 : i32
    %c0_i32_1 = arith.constant 0 : i32
    return %c0_i32, %c0_i32_0 : i32, i32
  }
  func.func @transform_6(%arg0: i32, %arg1: i32, %arg2: memref<2xi32, #tpu.memory_space<smem>>, %arg3: memref<2xi32, #tpu.memory_space<smem>>) -> (i32, i32) {
    %c0_i32 = arith.constant 0 : i32
    %c0_i32_0 = arith.constant 0 : i32
    return %arg0, %c0_i32 : i32, i32
  }
  func.func @transform_7(%arg0: i32, %arg1: i32, %arg2: memref<2xi32, #tpu.memory_space<smem>>, %arg3: memref<2xi32, #tpu.memory_space<smem>>) -> (i32, i32) {
    %c0_i32 = arith.constant 0 : i32
    %c0_i32_0 = arith.constant 0 : i32
    %c0_i32_1 = arith.constant 0 : i32
    return %c0_i32, %c0_i32_0 : i32, i32
  }
}

</mosaic_0001>

<llo_original>
// kernel: tpu_custom_call.1
$region0: #{tpu_custom_call.1}
  #allocation0 [shape = 'u32[]', space=smem, size = 0x4, offset = 0x4, fixed_abs, tag = 'smem constant byte address 0x4 - core index']
  #allocation1 [shape = 'u32[144,128]{1,0:T(1,128)}', space=vmem, size = 0x12000, scoped, tag = 'internal scratch']
  #allocation2 [shape = 'f32[128,128]{1,0:T(8,128)}', space=vmem, size = 0x10000, scoped, tag = 'scratch operand']
  #allocation3 [shape = 'f32[2,128]{1,0:T(2,128)}', space=vmem, size = 0x400, scoped, tag = 'scratch operand']
  #allocation4 [shape = 's32[1]{0}', space=sflag, size = 0x4, scoped, tag = 'scoped memory for tpu_custom_call.1']
  #allocation5 [shape = 'u8[512]{0}', space=smem, size = 0x200, scoped, tag = 'prefetched SMEM operand 0']
  #allocation6 [shape = 'u8[512]{0}', space=smem, size = 0x200, scoped, tag = 'prefetched SMEM operand 1']
  %s0 = inlined_call_operand.hbm [shape: s32[2], index: 0, kind: input, shape index: {}]
  %s1 = inlined_call_operand.vmem [shape: s32[2], index: 1, kind: input, shape index: {}]
  %s2 = inlined_call_operand.hbm [shape: bf16[256,256], index: 2, kind: input, shape index: {}]
  %s3 = inlined_call_operand.hbm [shape: f32[256,128], index: 3, kind: input, shape index: {}]
  %s4 = inlined_call_operand.vmem [shape: f32[2,128], index: 4, kind: input, shape index: {}]
  %s5 = inlined_call_operand.hbm [shape: bf16[128,128], index: 5, kind: input, shape index: {}]
  %s6 = inlined_call_operand.hbm [shape: bf16[128,128], index: 6, kind: input, shape index: {}]
  %s7 = inlined_call_operand.vmem [shape: f32[4,128], index: 7, kind: input, shape index: {}]
  %s8 = inlined_call_operand.hbm [shape: f32[256,128], index: 8, kind: output, shape index: {0}]
  %s9 = inlined_call_operand.hbm [shape: f32[2,128], index: 9, kind: output, shape index: {1}]
  %10 = xla_tuple %s8, %s9
  %s11 = sld [smem:[#allocation0]]
  $region101: #{tpu_custom_call.1} parent=0
    _
  %s13 = ssub.s32 1, %s11
  %s14 = scalar_select 0, %s13, %s11
  %16 = dma.hbm_to_smem %s0, 16, [#allocation5], [#allocation4]
  %s17 = sshll.u32 %s1, 4
  %s18 = int_to_ptr.vmem [resolvable:$true] %s17
  %20 = dma.vmem_to_smem %s18, 16, [#allocation6], [#allocation4]
  %21 = dma.done [#allocation4], 32
  %22 = sfence
  $region1: #{tpu_custom_call.1} parent=0
    #allocation7 [shape = 'u8[65536]{0}', space=vmem, size = 0x10000, scoped, tag = 'input window, operand 2']
    #allocation8 [shape = 's32[2]{0}', space=sflag, size = 0x8, scoped, tag = 'scoped memory for tpu_custom_call.1']
    #allocation9 [shape = 's32[2]{0}', space=sflag, size = 0x8, scoped, tag = 'scoped memory for tpu_custom_call.1']
    #allocation10 [shape = 'u8[131072]{0}', space=vmem, size = 0x20000, scoped, tag = 'input window, operand 3']
    #allocation11 [shape = 's32[2]{0}', space=sflag, size = 0x8, scoped, tag = 'scoped memory for tpu_custom_call.1']
    #allocation12 [shape = 'u8[32768]{0}', space=vmem, size = 0x8000, scoped, tag = 'input window, operand 5, single buffered']
    #allocation13 [shape = 'u8[32768]{0}', space=vmem, size = 0x8000, scoped, tag = 'input window, operand 6, single buffered']
    #allocation14 [shape = 's32[1]{0}', space=sflag, size = 0x4, scoped, tag = 'scoped memory for tpu_custom_call.1']
    #allocation15 [shape = 'u8[131072]{0}', space=vmem, size = 0x20000, scoped, tag = 'output window, operand 0']
    #allocation16 [shape = 'u8[1024]{0}', space=vmem, size = 0x400, scoped, tag = 'output window, operand 1, single buffered']
    #allocation17 [shape = 's32[1]{0}', space=sflag, size = 0x4, scoped, tag = 'scoped memory for tpu_custom_call.1']
    %23 = vsyncpa [#allocation8], 0
    %s24 = scalar_lea.sflag [#allocation8], 1
    %25 = vsyncpa %s24, 0
    %26 = vsyncpa [#allocation11], 0
    %s27 = scalar_lea.sflag [#allocation11], 1
    %28 = vsyncpa %s27, 0
    %29 = vsyncpa [#allocation14], 0
    %30 = vsyncpa [#allocation9], 0
    %s31 = scalar_lea.sflag [#allocation9], 1
    %32 = vsyncpa %s31, 0
    %33 = vsyncpa [#allocation17], 0
    loop: start=0, step=1, limit=6
    $region2: #{tpu_custom_call.1} parent=1 // loop_pre_header
      _
    $region3: #{tpu_custom_call.1} parent=1 // loop_header
      %s35 = sphi 0, %s39
      %p36 = scmp.ge.s32.totalorder %s35, 6
      %s42 = sphi 0, %s54
      %s43 = sphi 0, %s50
      %s44 = sphi 0, %s42
      %s45 = sphi 0, %s43
      %s46 = sphi 0, %s44
      %s47 = sphi 0, %s45
      %s71 = sphi 0, %s73
      %s74 = sphi 0, %s71
      %s75 = sphi 0, %s74
      %s91 = sphi 0, %s75
      %s109 = sphi 0, %s111
      %s112 = sphi 0, %s109
      %s113 = sphi 0, %s112
      %s129 = sphi 0, %s113
      %s133 = sphi 0, %s133
      %s135 = sphi 0, %s133
      %s136 = sphi 0, %s135
      %s150 = sphi 0, %s136
      %s154 = sphi 0, %s154
      %s156 = sphi 0, %s154
      %s157 = sphi 0, %s156
      %s171 = sphi 0, %s157
      %s175 = sphi 0, %s175
      %s177 = sphi 0, %s175
      %s178 = sphi 0, %s177
      %s192 = sphi 0, %s178
      %s196 = sphi 0, %s196
      %s198 = sphi 0, %s196
      %s199 = sphi 0, %s198
      %s213 = sphi 0, %s199
      %s219 = sphi 0, %s221
      %s222 = sphi 0, %s219
      %s223 = sphi 0, %s222
      %s239 = sphi 0, %s223
      %s243 = sphi 0, %s243
      %s245 = sphi 0, %s243
      %s246 = sphi 0, %s245
      %s260 = sphi 0, %s246
    $region4: #{tpu_custom_call.1} parent=1 // loop_header_branch
      %38 = sbr.rel (%p36) target = $region8
    $region5: #{tpu_custom_call.1} parent=1 // loop_body
      %s40 = ssub.s32 %s35, 1
      %s41 = ssub.s32 %s35, 2
      %s48 = sadd.s32 1, %s43
      %p49 = scmp.ge.s32.totalorder %s48, 2
      %s50 = scalar_select %p49, 0, %s48
      %s51 = sadd.s32 1, %s42
      %s52 = scalar_select %p49, %s51, %s42
      %p53 = scmp.ge.s32.totalorder %s52, 2
      %s54 = scalar_select %p53, 0, %s52
      %s55 = sld [smem:[#allocation5 + %s42]]
      %p56 = scmp.gt.s32.totalorder %s43, %s55
      %s57 = scalar_select %p56, %s43, %s55
      %s58 = sld [smem:[#allocation6 + %s42]]
      %p59 = scmp.lt.s32.totalorder %s57, %s58
      %s60 = scalar_select %p59, %s57, %s58
      %s61 = sld [smem:[#allocation5 + %s54]]
      %p62 = scmp.gt.s32.totalorder %s50, %s61
      %s63 = scalar_select %p62, %s50, %s61
      %s64 = sld [smem:[#allocation6 + %s54]]
      %p65 = scmp.lt.s32.totalorder %s63, %s64
      %s66 = scalar_select %p65, %s63, %s64
      %s67 = ssub.s32 %s42, %s54
      %s68 = ssub.s32 %s60, %s66
      %s69 = sor.u32 %s67, %s68
      %p70 = scmp.eq.s32.totalorder %s69, 0
      %s72 = sadd.s32 %s71, 1
      %s73 = scalar_select %p70, %s71, %s72
      %p76 = pneg %p70
      %p77 = scmp.eq.s32.totalorder %s35, 3
      %p78 = por %p76, %p77
      %p79 = scmp.ne.s32.totalorder %s71, %s74
      %p80 = scmp.eq.s32.totalorder %s35, 0
      %p81 = por %p79, %p80
      %p82 = scmp.ne.s32.totalorder %s71, %s74
      %p83 = scmp.eq.s32.totalorder %s40, 3
      %p84 = por %p82, %p83
      %p85 = scmp.ne.s32.totalorder %s74, %s75
      %p86 = scmp.eq.s32.totalorder %s40, 0
      %p87 = por %p85, %p86
      %p88 = scmp.ne.s32.totalorder %s74, %s75
      %p89 = scmp.eq.s32.totalorder %s41, 3
      %p90 = por %p88, %p89
      %p92 = scmp.ne.s32.totalorder %s75, %s91
      %p93 = scmp.eq.s32.totalorder %s41, 0
      %p94 = por %p92, %p93
      %s95 = sld [smem:[#allocation5 + %s42]]
      %p96 = scmp.gt.s32.totalorder %s43, %s95
      %s97 = scalar_select %p96, %s43, %s95
      %s98 = sld [smem:[#allocation6 + %s42]]
      %p99 = scmp.lt.s32.totalorder %s97, %s98
      %s100 = scalar_select %p99, %s97, %s98
      %s101 = sld [smem:[#allocation5 + %s54]]
      %p102 = scmp.gt.s32.totalorder %s50, %s101
      %s103 = scalar_select %p102, %s50, %s101
      %s104 = sld [smem:[#allocation6 + %s54]]
      %p105 = scmp.lt.s32.totalorder %s103, %s104
      %s106 = scalar_select %p105, %s103, %s104
      %s107 = ssub.s32 %s100, %s106
      %p108 = scmp.eq.s32.totalorder %s107, 0
      %s110 = sadd.s32 %s109, 1
      %s111 = scalar_select %p108, %s109, %s110
      %p114 = pneg %p108
      %p115 = scmp.eq.s32.totalorder %s35, 3
      %p116 = por %p114, %p115
      %p117 = scmp.ne.s32.totalorder %s109, %s112
      %p118 = scmp.eq.s32.totalorder %s35, 0
      %p119 = por %p117, %p118
      %p120 = scmp.ne.s32.totalorder %s109, %s112
      %p121 = scmp.eq.s32.totalorder %s40, 3
      %p122 = por %p120, %p121
      %p123 = scmp.ne.s32.totalorder %s112, %s113
      %p124 = scmp.eq.s32.totalorder %s40, 0
      %p125 = por %p123, %p124
      %p126 = scmp.ne.s32.totalorder %s112, %s113
      %p127 = scmp.eq.s32.totalorder %s41, 3
      %p128 = por %p126, %p127
      %p130 = scmp.ne.s32.totalorder %s113, %s129
      %p131 = scmp.eq.s32.totalorder %s41, 0
      %p132 = por %p130, %p131
      %s134 = sadd.s32 %s133, 1
      %p137 = scmp.eq.s32.totalorder %s35, 3
      %p138 = scmp.ne.s32.totalorder %s133, %s135
      %p139 = scmp.eq.s32.totalorder %s35, 0
      %p140 = por %p138, %p139
      %p141 = scmp.ne.s32.totalorder %s133, %s135
      %p142 = scmp.eq.s32.totalorder %s40, 3
      %p143 = por %p141, %p142
      %p144 = scmp.ne.s32.totalorder %s135, %s136
      %p145 = scmp.eq.s32.totalorder %s40, 0
      %p146 = por %p144, %p145
      %p147 = scmp.ne.s32.totalorder %s135, %s136
      %p148 = scmp.eq.s32.totalorder %s41, 3
      %p149 = por %p147, %p148
      %p151 = scmp.ne.s32.totalorder %s136, %s150
      %p152 = scmp.eq.s32.totalorder %s41, 0
      %p153 = por %p151, %p152
      %s155 = sadd.s32 %s154, 1
      %p158 = scmp.eq.s32.totalorder %s35, 3
      %p159 = scmp.ne.s32.totalorder %s154, %s156
      %p160 = scmp.eq.s32.totalorder %s35, 0
      %p161 = por %p159, %p160
      %p162 = scmp.ne.s32.totalorder %s154, %s156
      %p163 = scmp.eq.s32.totalorder %s40, 3
      %p164 = por %p162, %p163
      %p165 = scmp.ne.s32.totalorder %s156, %s157
      %p166 = scmp.eq.s32.totalorder %s40, 0
      %p167 = por %p165, %p166
      %p168 = scmp.ne.s32.totalorder %s156, %s157
      %p169 = scmp.eq.s32.totalorder %s41, 3
      %p170 = por %p168, %p169
      %p172 = scmp.ne.s32.totalorder %s157, %s171
      %p173 = scmp.eq.s32.totalorder %s41, 0
      %p174 = por %p172, %p173
      %s176 = sadd.s32 %s175, 1
      %p179 = scmp.eq.s32.totalorder %s35, 3
      %p180 = scmp.ne.s32.totalorder %s175, %s177
      %p181 = scmp.eq.s32.totalorder %s35, 0
      %p182 = por %p180, %p181
      %p183 = scmp.ne.s32.totalorder %s175, %s177
      %p184 = scmp.eq.s32.totalorder %s40, 3
      %p185 = por %p183, %p184
      %p186 = scmp.ne.s32.totalorder %s177, %s178
      %p187 = scmp.eq.s32.totalorder %s40, 0
      %p188 = por %p186, %p187
      %p189 = scmp.ne.s32.totalorder %s177, %s178
      %p190 = scmp.eq.s32.totalorder %s41, 3
      %p191 = por %p189, %p190
      %p193 = scmp.ne.s32.totalorder %s178, %s192
      %p194 = scmp.eq.s32.totalorder %s41, 0
      %p195 = por %p193, %p194
      %s197 = sadd.s32 %s196, 1
      %p200 = scmp.eq.s32.totalorder %s35, 3
      %p201 = scmp.ne.s32.totalorder %s196, %s198
      %p202 = scmp.eq.s32.totalorder %s35, 0
      %p203 = por %p201, %p202
      %p204 = scmp.ne.s32.totalorder %s196, %s198
      %p205 = scmp.eq.s32.totalorder %s40, 3
      %p206 = por %p204, %p205
      %p207 = scmp.ne.s32.totalorder %s198, %s199
      %p208 = scmp.eq.s32.totalorder %s40, 0
      %p209 = por %p207, %p208
      %p210 = scmp.ne.s32.totalorder %s198, %s199
      %p211 = scmp.eq.s32.totalorder %s41, 3
      %p212 = por %p210, %p211
      %p214 = scmp.ne.s32.totalorder %s199, %s213
      %p215 = scmp.eq.s32.totalorder %s41, 0
      %p216 = por %p214, %p215
      %s217 = ssub.s32 %s42, %s54
      %p218 = scmp.eq.s32.totalorder %s217, 0
      %s220 = sadd.s32 %s219, 1
      %s221 = scalar_select %p218, %s219, %s220
      %p224 = pneg %p218
      %p225 = scmp.eq.s32.totalorder %s35, 3
      %p226 = por %p224, %p225
      %p227 = scmp.ne.s32.totalorder %s219, %s222
      %p228 = scmp.eq.s32.totalorder %s35, 0
      %p229 = por %p227, %p228
      %p230 = scmp.ne.s32.totalorder %s219, %s222
      %p231 = scmp.eq.s32.totalorder %s40, 3
      %p232 = por %p230, %p231
      %p233 = scmp.ne.s32.totalorder %s222, %s223
      %p234 = scmp.eq.s32.totalorder %s40, 0
      %p235 = por %p233, %p234
      %p236 = scmp.ne.s32.totalorder %s222, %s223
      %p237 = scmp.eq.s32.totalorder %s41, 3
      %p238 = por %p236, %p237
      %p240 = scmp.ne.s32.totalorder %s223, %s239
      %p241 = scmp.eq.s32.totalorder %s41, 0
      %p242 = por %p240, %p241
      %s244 = sadd.s32 %s243, 1
      %p247 = scmp.eq.s32.totalorder %s35, 3
      %p248 = scmp.ne.s32.totalorder %s243, %s245
      %p249 = scmp.eq.s32.totalorder %s35, 0
      %p250 = por %p248, %p249
      %p251 = scmp.ne.s32.totalorder %s243, %s245
      %p252 = scmp.eq.s32.totalorder %s40, 3
      %p253 = por %p251, %p252
      %p254 = scmp.ne.s32.totalorder %s245, %s246
      %p255 = scmp.eq.s32.totalorder %s40, 0
      %p256 = por %p254, %p255
      %p257 = scmp.ne.s32.totalorder %s245, %s246
      %p258 = scmp.eq.s32.totalorder %s41, 3
      %p259 = por %p257, %p258
      %p261 = scmp.ne.s32.totalorder %s246, %s260
      %p262 = scmp.eq.s32.totalorder %s41, 0
      %p263 = por %p261, %p262
      %p264 = scmp.le.s32.totalorder 1, %s35
      %p265 = scmp.lt.s32.totalorder %s35, 5
      %p266 = pnand %p264, %p265
      %p267 = pneg %p266
      // Predicated region
      $region9: #{tpu_custom_call.1} parent=5 // pred_check
        _
      $region10: #{tpu_custom_call.1} parent=5 // pred_check_branch
        %269 = sbr.rel (%p266) target = $region12
      $region11: #{tpu_custom_call.1} parent=5 // pred_region
        %s270 = ssub.s32 %s35, 1
        // Predicated region
        $region13: #{tpu_custom_call.1} parent=11 // pred_check
          %p271 = pneg %p146
        $region14: #{tpu_custom_call.1} parent=11 // pred_check_branch
          %273 = sbr.rel (%p271) target = $region16
        $region15: #{tpu_custom_call.1} parent=11 // pred_region
          _
        $region16: #{tpu_custom_call.1} parent=11 // pred_fallthru
          _
        // Predicated region
        $region17: #{tpu_custom_call.1} parent=11 // pred_check
          %p274 = pneg %p167
        $region18: #{tpu_custom_call.1} parent=11 // pred_check_branch
          %276 = sbr.rel (%p274) target = $region20
        $region19: #{tpu_custom_call.1} parent=11 // pred_region
          %s278 = ssub.s32 1024, 1024
          %279 = vsyncadd [#allocation11], %s278
          %s280 = sshll.u32 [#allocation12], 4
          %s281 = int_to_ptr.vmem [resolvable:$true] %s280
          %286 = dma.hbm_to_vmem [thread:$0]  %s5, 1024, %s281, [#allocation11], 64, 64, 4
        $region20: #{tpu_custom_call.1} parent=11 // pred_fallthru
          _
        // Predicated region
        $region21: #{tpu_custom_call.1} parent=11 // pred_check
          %p287 = pneg %p188
        $region22: #{tpu_custom_call.1} parent=11 // pred_check_branch
          %289 = sbr.rel (%p287) target = $region24
        $region23: #{tpu_custom_call.1} parent=11 // pred_region
          %s291 = ssub.s32 1024, 1024
          %292 = vsyncadd [#allocation14], %s291
          %s293 = sshll.u32 [#allocation13], 4
          %s294 = int_to_ptr.vmem [resolvable:$true] %s293
          %299 = dma.hbm_to_vmem [thread:$0]  %s6, 1024, %s294, [#allocation14], 64, 64, 4
        $region24: #{tpu_custom_call.1} parent=11 // pred_fallthru
          _
        // Predicated region
        $region25: #{tpu_custom_call.1} parent=11 // pred_check
          %p300 = pneg %p209
        $region26: #{tpu_custom_call.1} parent=11 // pred_check_branch
          %302 = sbr.rel (%p300) target = $region28
        $region27: #{tpu_custom_call.1} parent=11 // pred_region
          _
        $region28: #{tpu_custom_call.1} parent=11 // pred_fallthru
          _
      $region12: #{tpu_custom_call.1} parent=5 // pred_fallthru
        _
      %p303 = scmp.lt.s32.totalorder %s35, 4
      // Predicated region
      $region29: #{tpu_custom_call.1} parent=5 // pred_check
        %p304 = pneg %p303
      $region30: #{tpu_custom_call.1} parent=5 // pred_check_branch
        %306 = sbr.rel (%p304) target = $region32
      $region31: #{tpu_custom_call.1} parent=5 // pred_region
        // Predicated region
        $region33: #{tpu_custom_call.1} parent=31 // pred_check
          %p307 = pneg %p81
        $region34: #{tpu_custom_call.1} parent=31 // pred_check_branch
          %309 = sbr.rel (%p307) target = $region36
        $region35: #{tpu_custom_call.1} parent=31 // pred_region
          %s310 = sand.u32 %s71, 1
          %s311 = scalar_lea.sflag [#allocation8], %s310
          %s312 = sand.u32 %s71, 1
          %s313 = smul.addr %s312, 64
          %s314 = scalar_lea.vmem [#allocation7], %s313
          %s315 = sld [smem:[#allocation5 + %s42]]
          %p316 = scmp.gt.s32.totalorder %s43, %s315
          %s317 = scalar_select %p316, %s43, %s315
          %s318 = sld [smem:[#allocation6 + %s42]]
          %p319 = scmp.lt.s32.totalorder %s317, %s318
          %s320 = scalar_select %p319, %s317, %s318
          %s321 = smul.u32 16, %s42
          %s323 = ssub.s32 1024, 1024
          %324 = vsyncadd %s311, %s323
          %s325 = smul.addr %s321, 2
          %s326 = sadd.s32 %s320, %s325
          %s327 = smul.addr %s326, 64
          %s328 = scalar_lea.hbm %s2, %s327
          %s329 = sshll.u32 %s314, 4
          %s330 = int_to_ptr.vmem [resolvable:$true] %s329
          %335 = dma.hbm_to_vmem [thread:$0]  %s328, 1024, %s330, %s311, 128, 64, 4
        $region36: #{tpu_custom_call.1} parent=31 // pred_fallthru
          _
        // Predicated region
        $region37: #{tpu_custom_call.1} parent=31 // pred_check
          %p336 = pneg %p119
        $region38: #{tpu_custom_call.1} parent=31 // pred_check_branch
          %338 = sbr.rel (%p336) target = $region40
        $region39: #{tpu_custom_call.1} parent=31 // pred_region
          %s339 = sand.u32 %s35, 1
          %s340 = scalar_lea.sflag [#allocation11], %s339
          %s341 = sand.u32 %s109, 1
          %s342 = smul.addr %s341, 128
          %s343 = scalar_lea.vmem [#allocation10], %s342
          %s344 = sld [smem:[#allocation5 + %s42]]
          %p345 = scmp.gt.s32.totalorder %s43, %s344
          %s346 = scalar_select %p345, %s43, %s344
          %s347 = sld [smem:[#allocation6 + %s42]]
          %p348 = scmp.lt.s32.totalorder %s346, %s347
          %s349 = scalar_select %p348, %s346, %s347
          %s350 = smul.u32 16, %s349
          %s352 = ssub.s32 2048, 2048
          %353 = vsyncadd %s340, %s352
          %s354 = smul.addr %s350, 128
          %s355 = scalar_lea.hbm %s3, %s354
          %s356 = sshll.u32 %s343, 4
          %s357 = int_to_ptr.vmem [resolvable:$true] %s356
          %362 = dma.hbm_to_vmem [thread:$0]  %s355, 2048, %s357, %s340, 128, 128, 8
        $region40: #{tpu_custom_call.1} parent=31 // pred_fallthru
          _
      $region32: #{tpu_custom_call.1} parent=5 // pred_fallthru
        _
      %p363 = scmp.le.s32.totalorder 1, %s35
      %p364 = scmp.lt.s32.totalorder %s35, 5
      %p365 = pnand %p363, %p364
      %p366 = pneg %p365
      // Predicated region
      $region41: #{tpu_custom_call.1} parent=5 // pred_check
        _
      $region42: #{tpu_custom_call.1} parent=5 // pred_check_branch
        %368 = sbr.rel (%p365) target = $region44
      $region43: #{tpu_custom_call.1} parent=5 // pred_region
        %s369 = ssub.s32 %s35, 1
        %s370 = sand.u32 %s74, 1
        %s371 = scalar_lea.sflag [#allocation8], %s370
        %s372 = sand.u32 %s74, 1
        %s373 = smul.addr %s372, 64
        %s374 = scalar_lea.vmem [#allocation7], %s373
        // Predicated region
        $region45: #{tpu_custom_call.1} parent=43 // pred_check
          %p375 = pneg %p87
        $region46: #{tpu_custom_call.1} parent=43 // pred_check_branch
          %377 = sbr.rel (%p375) target = $region48
        $region47: #{tpu_custom_call.1} parent=43 // pred_region
          %378 = dma.done %s371, 1024
        $region48: #{tpu_custom_call.1} parent=43 // pred_fallthru
          _
        %s379 = sand.u32 %s40, 1
        %s380 = scalar_lea.sflag [#allocation11], %s379
        %s381 = sand.u32 %s112, 1
        %s382 = smul.addr %s381, 128
        %s383 = scalar_lea.vmem [#allocation10], %s382
        // Predicated region
        $region49: #{tpu_custom_call.1} parent=43 // pred_check
          %p384 = pneg %p125
        $region50: #{tpu_custom_call.1} parent=43 // pred_check_branch
          %386 = sbr.rel (%p384) target = $region52
        $region51: #{tpu_custom_call.1} parent=43 // pred_region
          %387 = dma.done %s380, 2048
        $region52: #{tpu_custom_call.1} parent=43 // pred_fallthru
          _
        // Predicated region
        $region53: #{tpu_custom_call.1} parent=43 // pred_check
          %p388 = pneg %p167
        $region54: #{tpu_custom_call.1} parent=43 // pred_check_branch
          %390 = sbr.rel (%p388) target = $region56
        $region55: #{tpu_custom_call.1} parent=43 // pred_region
          %391 = dma.done [#allocation11], 1024
        $region56: #{tpu_custom_call.1} parent=43 // pred_fallthru
          _
        // Predicated region
        $region57: #{tpu_custom_call.1} parent=43 // pred_check
          %p392 = pneg %p188
        $region58: #{tpu_custom_call.1} parent=43 // pred_check_branch
          %394 = sbr.rel (%p392) target = $region60
        $region59: #{tpu_custom_call.1} parent=43 // pred_region
          %395 = dma.done [#allocation14], 1024
        $region60: #{tpu_custom_call.1} parent=43 // pred_fallthru
          _
        %s396 = sand.u32 %s74, 1
        %s397 = scalar_lea.sflag [#allocation8], %s396
        %s398 = sand.u32 %s74, 1
        %s399 = smul.addr %s398, 64
        %s400 = scalar_lea.vmem [#allocation7], %s399
        %p401 = pneg %p87
        %p402 = pneg %p84
        %s403 = sand.u32 %s40, 1
        %s404 = scalar_lea.sflag [#allocation11], %s403
        %s405 = sand.u32 %s112, 1
        %s406 = smul.addr %s405, 128
        %s407 = scalar_lea.vmem [#allocation10], %s406
        %p408 = pneg %p125
        %p409 = pneg %p122
        %p410 = pneg %p146
        %p411 = pneg %p143
        %p412 = pneg %p167
        %p413 = pneg %p164
        %p414 = pneg %p188
        %p415 = pneg %p185
        %p416 = pneg %p209
        %p417 = pneg %p206
        %p418 = pneg %p235
        %p419 = pneg %p232
        %s420 = sand.u32 %s222, 1
        %s421 = scalar_lea.sflag [#allocation9], %s420
        %s422 = sand.u32 %s222, 1
        %s423 = smul.addr %s422, 128
        %s424 = scalar_lea.vmem [#allocation15], %s423
        %p425 = pneg %p256
        %p426 = pneg %p253
        %s427 = sld [smem:[#allocation5 + %s44]]
        %p428 = scmp.gt.s32.totalorder %s45, %s427
        %s429 = scalar_select %p428, %s45, %s427
        %s430 = sld [smem:[#allocation6 + %s44]]
        %p431 = scmp.lt.s32.totalorder %s429, %s430
        %s432 = scalar_select %p431, %s429, %s430
        %s433 = smul.u32 16, %s44
        %s434 = sld [smem:[#allocation5 + %s44]]
        %p435 = scmp.gt.s32.totalorder %s45, %s434
        %s436 = scalar_select %p435, %s45, %s434
        %s437 = sld [smem:[#allocation6 + %s44]]
        %p438 = scmp.lt.s32.totalorder %s436, %s437
        %s439 = scalar_select %p438, %s436, %s437
        %s440 = smul.u32 16, %s439
        %s441 = smul.u32 16, %s44
        %p443 = scmp.eq.s32.totalorder %s45, 0
        // Predicated region
        $region61: #{tpu_custom_call.1} parent=43 // pred_check
          %p444 = pneg %p443
        $region62: #{tpu_custom_call.1} parent=43 // pred_check_branch
          %446 = sbr.rel (%p444) target = $region64
        $region63: #{tpu_custom_call.1} parent=43 // pred_region
          %447 = vst [vmem:[#allocation2] sm:$0xff] 0.0
          %448 = vst [vmem:[#allocation2 + $0x8] sm:$0xff] 0.0
          %449 = vst [vmem:[#allocation2 + $0x10] sm:$0xff] 0.0
          %450 = vst [vmem:[#allocation2 + $0x18] sm:$0xff] 0.0
          %451 = vst [vmem:[#allocation2 + $0x20] sm:$0xff] 0.0
          %452 = vst [vmem:[#allocation2 + $0x28] sm:$0xff] 0.0
          %453 = vst [vmem:[#allocation2 + $0x30] sm:$0xff] 0.0
          %454 = vst [vmem:[#allocation2 + $0x38] sm:$0xff] 0.0
          %455 = vst [vmem:[#allocation2 + $0x40] sm:$0xff] 0.0
          %456 = vst [vmem:[#allocation2 + $0x48] sm:$0xff] 0.0
          %457 = vst [vmem:[#allocation2 + $0x50] sm:$0xff] 0.0
          %458 = vst [vmem:[#allocation2 + $0x58] sm:$0xff] 0.0
          %459 = vst [vmem:[#allocation2 + $0x60] sm:$0xff] 0.0
          %460 = vst [vmem:[#allocation2 + $0x68] sm:$0xff] 0.0
          %461 = vst [vmem:[#allocation2 + $0x70] sm:$0xff] 0.0
          %462 = vst [vmem:[#allocation2 + $0x78] sm:$0xff] 0.0
        $region64: #{tpu_custom_call.1} parent=43 // pred_fallthru
          _
        %p463 = scmp.eq.s32.totalorder %s44, 0
        %p464 = pnand %p463, %p443
        %p465 = pneg %p464
        // Predicated region
        $region65: #{tpu_custom_call.1} parent=43 // pred_check
          _
        $region66: #{tpu_custom_call.1} parent=43 // pred_check_branch
          %467 = sbr.rel (%p464) target = $region68
        $region67: #{tpu_custom_call.1} parent=43 // pred_region
          %468 = vst [vmem:[#allocation3] sm:$0x3] 0.0
        $region68: #{tpu_custom_call.1} parent=43 // pred_fallthru
          _
        %s469 = sld [smem:[#allocation5 + %s44]]
        %p470 = scmp.ge.s32.totalorder %s45, %s469
        %s471 = sld [smem:[#allocation6 + %s44]]
        %p472 = scmp.le.s32.totalorder %s45, %s471
        %p473 = pnand %p470, %p472
        %p474 = pneg %p473
        // Predicated region
        $region69: #{tpu_custom_call.1} parent=43 // pred_check
          _
        $region70: #{tpu_custom_call.1} parent=43 // pred_check_branch
          %476 = sbr.rel (%p473) target = $region72
        $region71: #{tpu_custom_call.1} parent=43 // pred_region
          %v477 = vld [vmem:[%s383] sm:$0xff]
          %v478 = vld [vmem:[%s383 + $0x8] sm:$0xff]
          %v479 = vld [vmem:[%s383 + $0x10] sm:$0xff]
          %v480 = vld [vmem:[%s383 + $0x18] sm:$0xff]
          %v481 = vld [vmem:[%s383 + $0x20] sm:$0xff]
          %v482 = vld [vmem:[%s383 + $0x28] sm:$0xff]
          %v483 = vld [vmem:[%s383 + $0x30] sm:$0xff]
          %v484 = vld [vmem:[%s383 + $0x38] sm:$0xff]
          %v485 = vld [vmem:[%s383 + $0x40] sm:$0xff]
          %v486 = vld [vmem:[%s383 + $0x48] sm:$0xff]
          %v487 = vld [vmem:[%s383 + $0x50] sm:$0xff]
          %v488 = vld [vmem:[%s383 + $0x58] sm:$0xff]
          %v489 = vld [vmem:[%s383 + $0x60] sm:$0xff]
          %v490 = vld [vmem:[%s383 + $0x68] sm:$0xff]
          %v491 = vld [vmem:[%s383 + $0x70] sm:$0xff]
          %v492 = vld [vmem:[%s383 + $0x78] sm:$0xff]
          %v493 = vld [vmem:[%s4] sm:$0x1]
          %v494 = vlaneseq
          %v495 = vshrl.u32 %v494, 7
          %v496 = vsub.s32 0, %v495
          %v497 = vrot.slane %v493, %v496
          %v498 = vmul.f32 %v477, %v497
          %v499 = vmul.f32 %v478, %v497
          %v500 = vmul.f32 %v479, %v497
          %v501 = vmul.f32 %v480, %v497
          %v502 = vmul.f32 %v481, %v497
          %v503 = vmul.f32 %v482, %v497
          %v504 = vmul.f32 %v483, %v497
          %v505 = vmul.f32 %v484, %v497
          %v506 = vmul.f32 %v485, %v497
          %v507 = vmul.f32 %v486, %v497
          %v508 = vmul.f32 %v487, %v497
          %v509 = vmul.f32 %v488, %v497
          %v510 = vmul.f32 %v489, %v497
          %v511 = vmul.f32 %v490, %v497
          %v512 = vmul.f32 %v491, %v497
          %v513 = vmul.f32 %v492, %v497
          %v514 = vld [vmem:[%s4 + $0x1] sm:$0x1]
          %v515 = vlaneseq
          %v516 = vshrl.u32 %v515, 7
          %v517 = vsub.s32 0, %v516
          %v518 = vrot.slane %v514, %v517
          %v519 = vadd.f32 %v498, %v518
          %v520 = vadd.f32 %v499, %v518
          %v521 = vadd.f32 %v500, %v518
          %v522 = vadd.f32 %v501, %v518
          %v523 = vadd.f32 %v502, %v518
          %v524 = vadd.f32 %v503, %v518
          %v525 = vadd.f32 %v504, %v518
          %v526 = vadd.f32 %v505, %v518
          %v527 = vadd.f32 %v506, %v518
          %v528 = vadd.f32 %v507, %v518
          %v529 = vadd.f32 %v508, %v518
          %v530 = vadd.f32 %v509, %v518
          %v531 = vadd.f32 %v510, %v518
          %v532 = vadd.f32 %v511, %v518
          %v533 = vadd.f32 %v512, %v518
          %v534 = vadd.f32 %v513, %v518
          %v535 = vld [vmem:[#allocation2] sm:$0xff]
          %v536 = vld [vmem:[#allocation2 + $0x8] sm:$0xff]
          %v537 = vld [vmem:[#allocation2 + $0x10] sm:$0xff]
          %v538 = vld [vmem:[#allocation2 + $0x18] sm:$0xff]
          %v539 = vld [vmem:[#allocation2 + $0x20] sm:$0xff]
          %v540 = vld [vmem:[#allocation2 + $0x28] sm:$0xff]
          %v541 = vld [vmem:[#allocation2 + $0x30] sm:$0xff]
          %v542 = vld [vmem:[#allocation2 + $0x38] sm:$0xff]
          %v543 = vld [vmem:[#allocation2 + $0x40] sm:$0xff]
          %v544 = vld [vmem:[#allocation2 + $0x48] sm:$0xff]
          %v545 = vld [vmem:[#allocation2 + $0x50] sm:$0xff]
          %v546 = vld [vmem:[#allocation2 + $0x58] sm:$0xff]
          %v547 = vld [vmem:[#allocation2 + $0x60] sm:$0xff]
          %v548 = vld [vmem:[#allocation2 + $0x68] sm:$0xff]
          %v549 = vld [vmem:[#allocation2 + $0x70] sm:$0xff]
          %v550 = vld [vmem:[#allocation2 + $0x78] sm:$0xff]
          %v551 = vld [vmem:[%s374] sm:$0xf]
          %v552 = vld [vmem:[%s374 + $0x4] sm:$0xf]
          %v553 = vld [vmem:[%s374 + $0x8] sm:$0xf]
          %v554 = vld [vmem:[%s374 + $0xc] sm:$0xf]
          %v555 = vld [vmem:[%s374 + $0x10] sm:$0xf]
          %v556 = vld [vmem:[%s374 + $0x14] sm:$0xf]
          %v557 = vld [vmem:[%s374 + $0x18] sm:$0xf]
          %v558 = vld [vmem:[%s374 + $0x1c] sm:$0xf]
          %v559 = vld [vmem:[%s374 + $0x20] sm:$0xf]
          %v560 = vld [vmem:[%s374 + $0x24] sm:$0xf]
          %v561 = vld [vmem:[%s374 + $0x28] sm:$0xf]
          %v562 = vld [vmem:[%s374 + $0x2c] sm:$0xf]
          %v563 = vld [vmem:[%s374 + $0x30] sm:$0xf]
          %v564 = vld [vmem:[%s374 + $0x34] sm:$0xf]
          %v565 = vld [vmem:[%s374 + $0x38] sm:$0xf]
          %v566 = vld [vmem:[%s374 + $0x3c] sm:$0xf]
          %v567 = vpack.c.bf16 %v520, %v519
          %v568 = vpack.c.bf16 %v522, %v521
          %v569 = vpack.c.bf16 %v524, %v523
          %v570 = vpack.c.bf16 %v526, %v525
          %v571 = vpack.c.bf16 %v528, %v527
          %v572 = vpack.c.bf16 %v530, %v529
          %v573 = vpack.c.bf16 %v532, %v531
          %v574 = vpack.c.bf16 %v534, %v533
          %v591 = vunpack.c.l.b16 %v551
          %v592 = vunpack.c.l.b16 %v552
          %v593 = vunpack.c.l.b16 %v553
          %v594 = vunpack.c.l.b16 %v554
          %v595 = vunpack.c.l.b16 %v555
          %v596 = vunpack.c.l.b16 %v556
          %v597 = vunpack.c.l.b16 %v557
          %v598 = vunpack.c.l.b16 %v558
          %v599 = vunpack.c.l.b16 %v559
          %v600 = vunpack.c.l.b16 %v560
          %v601 = vunpack.c.l.b16 %v561
          %v602 = vunpack.c.l.b16 %v562
          %v603 = vunpack.c.l.b16 %v563
          %v604 = vunpack.c.l.b16 %v564
          %v605 = vunpack.c.l.b16 %v565
          %v606 = vunpack.c.l.b16 %v566
          %v607 = vpack.c.b16 %v592, %v591
          %v608 = vpack.c.b16 %v594, %v593
          %v609 = vpack.c.b16 %v596, %v595
          %v610 = vpack.c.b16 %v598, %v597
          %v611 = vpack.c.b16 %v600, %v599
          %v612 = vpack.c.b16 %v602, %v601
          %v613 = vpack.c.b16 %v604, %v603
          %v614 = vpack.c.b16 %v606, %v605
          %623 = vmatprep.subr.bf16.mxu0 0
          %624 = vmatpush1.bf16.msra.mxu0 %v574
          %625 = vmatprep.subr.bf16.mxu0 0
          %626 = vmatpush1.bf16.msra.mxu0 %v573
          %627 = vmatprep.subr.bf16.mxu0 0
          %628 = vmatpush1.bf16.msra.mxu0 %v572
          %629 = vmatprep.subr.bf16.mxu0 0
          %630 = vmatpush1.bf16.msra.mxu0 %v571
          %631 = vmatprep.subr.bf16.mxu0 0
          %632 = vmatpush1.bf16.msra.mxu0 %v570
          %633 = vmatprep.subr.bf16.mxu0 0
          %634 = vmatpush1.bf16.msra.mxu0 %v569
          %635 = vmatprep.subr.bf16.mxu0 0
          %636 = vmatpush1.bf16.msra.mxu0 %v568
          %637 = vmatprep.subr.bf16.mxu0 0
          %638 = vmatpush1.bf16.msra.mxu0 %v567
          %639 = vmatprep.subr.bf16.mxu0 0
          %640 = vmatpush2.bf16.msra.mxu0 0
          %641 = vmatprep.subr.bf16.mxu0 0
          %642 = vmatpush2.bf16.msra.mxu0 0
          %643 = vmatprep.subr.bf16.mxu0 0
          %644 = vmatpush2.bf16.msra.mxu0 0
          %645 = vmatprep.subr.bf16.mxu0 0
          %646 = vmatpush2.bf16.msra.mxu0 0
          %647 = vmatprep.subr.bf16.mxu0 0
          %648 = vmatpush2.bf16.msra.mxu0 0
          %649 = vmatprep.subr.bf16.mxu0 0
          %650 = vmatpush2.bf16.msra.mxu0 0
          %651 = vmatprep.subr.bf16.mxu0 0
          %652 = vmatpush2.bf16.msra.mxu0 0
          %653 = vmatprep.subr.bf16.mxu0 0
          %654 = vmatpush2.bf16.msra.mxu0 0
          %655 = vmatprep.mubr.bf16.mxu0 0
          %656 = vmatmul.mubr.bf16.gmra.mxu0 %v607
          %v657 = vpop.f32.mrf.mxu0
          %v658 = vadd.f32 0.0, %v657
          %v659 = vpop.f32.mrf.mxu0
          %v660 = vpop.f32.mrf.mxu0
          %v661 = vadd.f32 0.0, %v660
          %v662 = vpop.f32.mrf.mxu0
          %663 = vmatprep.mubr.bf16.mxu0 0
          %664 = vmatmul.mubr.bf16.gmra.mxu0 %v608
          %v665 = vpop.f32.mrf.mxu0
          %v666 = vadd.f32 0.0, %v665
          %v667 = vpop.f32.mrf.mxu0
          %v668 = vpop.f32.mrf.mxu0
          %v669 = vadd.f32 0.0, %v668
          %v670 = vpop.f32.mrf.mxu0
          %671 = vmatprep.mubr.bf16.mxu0 0
          %672 = vmatmul.mubr.bf16.gmra.mxu0 %v609
          %v673 = vpop.f32.mrf.mxu0
          %v674 = vadd.f32 0.0, %v673
          %v675 = vpop.f32.mrf.mxu0
          %v676 = vpop.f32.mrf.mxu0
          %v677 = vadd.f32 0.0, %v676
          %v678 = vpop.f32.mrf.mxu0
          %679 = vmatprep.mubr.bf16.mxu0 0
          %680 = vmatmul.mubr.bf16.gmra.mxu0 %v610
          %v681 = vpop.f32.mrf.mxu0
          %v682 = vadd.f32 0.0, %v681
          %v683 = vpop.f32.mrf.mxu0
          %v684 = vpop.f32.mrf.mxu0
          %v685 = vadd.f32 0.0, %v684
          %v686 = vpop.f32.mrf.mxu0
          %687 = vmatprep.mubr.bf16.mxu0 0
          %688 = vmatmul.mubr.bf16.gmra.mxu0 %v611
          %v689 = vpop.f32.mrf.mxu0
          %v690 = vadd.f32 0.0, %v689
          %v691 = vpop.f32.mrf.mxu0
          %v692 = vpop.f32.mrf.mxu0
          %v693 = vadd.f32 0.0, %v692
          %v694 = vpop.f32.mrf.mxu0
          %695 = vmatprep.mubr.bf16.mxu0 0
          %696 = vmatmul.mubr.bf16.gmra.mxu0 %v612
          %v697 = vpop.f32.mrf.mxu0
          %v698 = vadd.f32 0.0, %v697
          %v699 = vpop.f32.mrf.mxu0
          %v700 = vpop.f32.mrf.mxu0
          %v701 = vadd.f32 0.0, %v700
          %v702 = vpop.f32.mrf.mxu0
          %703 = vmatprep.mubr.bf16.mxu0 0
          %704 = vmatmul.mubr.bf16.gmra.mxu0 %v613
          %v705 = vpop.f32.mrf.mxu0
          %v706 = vadd.f32 0.0, %v705
          %v707 = vpop.f32.mrf.mxu0
          %v708 = vpop.f32.mrf.mxu0
          %v709 = vadd.f32 0.0, %v708
          %v710 = vpop.f32.mrf.mxu0
          %711 = vmatprep.mubr.bf16.mxu0 0
          %712 = vmatmul.mubr.bf16.gmra.mxu0 %v614
          %v713 = vpop.f32.mrf.mxu0
          %v714 = vadd.f32 0.0, %v713
          %v715 = vpop.f32.mrf.mxu0
          %v716 = vpop.f32.mrf.mxu0
          %v717 = vadd.f32 0.0, %v716
          %v718 = vpop.f32.mrf.mxu0
          %719 = vdwg.mxu0
          %v720 = vadd.f32 %v535, %v658
          %v721 = vadd.f32 %v536, %v661
          %v722 = vadd.f32 %v537, %v666
          %v723 = vadd.f32 %v538, %v669
          %v724 = vadd.f32 %v539, %v674
          %v725 = vadd.f32 %v540, %v677
          %v726 = vadd.f32 %v541, %v682
          %v727 = vadd.f32 %v542, %v685
          %v728 = vadd.f32 %v543, %v690
          %v729 = vadd.f32 %v544, %v693
          %v730 = vadd.f32 %v545, %v698
          %v731 = vadd.f32 %v546, %v701
          %v732 = vadd.f32 %v547, %v706
          %v733 = vadd.f32 %v548, %v709
          %v734 = vadd.f32 %v549, %v714
          %v735 = vadd.f32 %v550, %v717
          %736 = vst [vmem:[#allocation2] sm:$0xff] %v720
          %737 = vst [vmem:[#allocation2 + $0x8] sm:$0xff] %v721
          %738 = vst [vmem:[#allocation2 + $0x10] sm:$0xff] %v722
          %739 = vst [vmem:[#allocation2 + $0x18] sm:$0xff] %v723
          %740 = vst [vmem:[#allocation2 + $0x20] sm:$0xff] %v724
          %741 = vst [vmem:[#allocation2 + $0x28] sm:$0xff] %v725
          %742 = vst [vmem:[#allocation2 + $0x30] sm:$0xff] %v726
          %743 = vst [vmem:[#allocation2 + $0x38] sm:$0xff] %v727
          %744 = vst [vmem:[#allocation2 + $0x40] sm:$0xff] %v728
          %745 = vst [vmem:[#allocation2 + $0x48] sm:$0xff] %v729
          %746 = vst [vmem:[#allocation2 + $0x50] sm:$0xff] %v730
          %747 = vst [vmem:[#allocation2 + $0x58] sm:$0xff] %v731
          %748 = vst [vmem:[#allocation2 + $0x60] sm:$0xff] %v732
          %749 = vst [vmem:[#allocation2 + $0x68] sm:$0xff] %v733
          %750 = vst [vmem:[#allocation2 + $0x70] sm:$0xff] %v734
          %751 = vst [vmem:[#allocation2 + $0x78] sm:$0xff] %v735
        $region72: #{tpu_custom_call.1} parent=43 // pred_fallthru
          _
        %p752 = scmp.eq.s32.totalorder %s45, 1
        // Predicated region
        $region73: #{tpu_custom_call.1} parent=43 // pred_check
          %p753 = pneg %p752
        $region74: #{tpu_custom_call.1} parent=43 // pred_check_branch
          %755 = sbr.rel (%p753) target = $region76
        $region75: #{tpu_custom_call.1} parent=43 // pred_region
          %v756 = vld [vmem:[#allocation2] sm:$0xff]
          %v757 = vld [vmem:[#allocation2 + $0x8] sm:$0xff]
          %v758 = vld [vmem:[#allocation2 + $0x10] sm:$0xff]
          %v759 = vld [vmem:[#allocation2 + $0x18] sm:$0xff]
          %v760 = vld [vmem:[#allocation2 + $0x20] sm:$0xff]
          %v761 = vld [vmem:[#allocation2 + $0x28] sm:$0xff]
          %v762 = vld [vmem:[#allocation2 + $0x30] sm:$0xff]
          %v763 = vld [vmem:[#allocation2 + $0x38] sm:$0xff]
          %v764 = vld [vmem:[#allocation2 + $0x40] sm:$0xff]
          %v765 = vld [vmem:[#allocation2 + $0x48] sm:$0xff]
          %v766 = vld [vmem:[#allocation2 + $0x50] sm:$0xff]
          %v767 = vld [vmem:[#allocation2 + $0x58] sm:$0xff]
          %v768 = vld [vmem:[#allocation2 + $0x60] sm:$0xff]
          %v769 = vld [vmem:[#allocation2 + $0x68] sm:$0xff]
          %v770 = vld [vmem:[#allocation2 + $0x70] sm:$0xff]
          %v771 = vld [vmem:[#allocation2 + $0x78] sm:$0xff]
          %v772 = vld [vmem:[#allocation12] sm:$0xf]
          %v773 = vld [vmem:[#allocation12 + $0x4] sm:$0xf]
          %v774 = vld [vmem:[#allocation12 + $0x8] sm:$0xf]
          %v775 = vld [vmem:[#allocation12 + $0xc] sm:$0xf]
          %v776 = vld [vmem:[#allocation12 + $0x10] sm:$0xf]
          %v777 = vld [vmem:[#allocation12 + $0x14] sm:$0xf]
          %v778 = vld [vmem:[#allocation12 + $0x18] sm:$0xf]
          %v779 = vld [vmem:[#allocation12 + $0x1c] sm:$0xf]
          %v780 = vld [vmem:[#allocation12 + $0x20] sm:$0xf]
          %v781 = vld [vmem:[#allocation12 + $0x24] sm:$0xf]
          %v782 = vld [vmem:[#allocation12 + $0x28] sm:$0xf]
          %v783 = vld [vmem:[#allocation12 + $0x2c] sm:$0xf]
          %v784 = vld [vmem:[#allocation12 + $0x30] sm:$0xf]
          %v785 = vld [vmem:[#allocation12 + $0x34] sm:$0xf]
          %v786 = vld [vmem:[#allocation12 + $0x38] sm:$0xf]
          %v787 = vld [vmem:[#allocation12 + $0x3c] sm:$0xf]
          %v788 = vld [vmem:[#allocation13] sm:$0xf]
          %v789 = vld [vmem:[#allocation13 + $0x4] sm:$0xf]
          %v790 = vld [vmem:[#allocation13 + $0x8] sm:$0xf]
          %v791 = vld [vmem:[#allocation13 + $0xc] sm:$0xf]
          %v792 = vld [vmem:[#allocation13 + $0x10] sm:$0xf]
          %v793 = vld [vmem:[#allocation13 + $0x14] sm:$0xf]
          %v794 = vld [vmem:[#allocation13 + $0x18] sm:$0xf]
          %v795 = vld [vmem:[#allocation13 + $0x1c] sm:$0xf]
          %v796 = vld [vmem:[#allocation13 + $0x20] sm:$0xf]
          %v797 = vld [vmem:[#allocation13 + $0x24] sm:$0xf]
          %v798 = vld [vmem:[#allocation13 + $0x28] sm:$0xf]
          %v799 = vld [vmem:[#allocation13 + $0x2c] sm:$0xf]
          %v800 = vld [vmem:[#allocation13 + $0x30] sm:$0xf]
          %v801 = vld [vmem:[#allocation13 + $0x34] sm:$0xf]
          %v802 = vld [vmem:[#allocation13 + $0x38] sm:$0xf]
          %v803 = vld [vmem:[#allocation13 + $0x3c] sm:$0xf]
          %v804 = vpack.c.bf16 %v757, %v756
          %v805 = vpack.c.bf16 %v759, %v758
          %v806 = vpack.c.bf16 %v761, %v760
          %v807 = vpack.c.bf16 %v763, %v762
          %v808 = vpack.c.bf16 %v765, %v764
          %v809 = vpack.c.bf16 %v767, %v766
          %v810 = vpack.c.bf16 %v769, %v768
          %v811 = vpack.c.bf16 %v771, %v770
          %v812 = vld [vmem:[%s7] sm:$0x1]
          %v813 = vlaneseq
          %v814 = vshrl.u32 %v813, 7
          %v815 = vsub.s32 0, %v814
          %v816 = vrot.slane %v812, %v815
          %v833 = vunpack.c.l.b16 %v772
          %v834 = vunpack.c.l.b16 %v773
          %v835 = vunpack.c.l.b16 %v774
          %v836 = vunpack.c.l.b16 %v775
          %v837 = vunpack.c.l.b16 %v776
          %v838 = vunpack.c.l.b16 %v777
          %v839 = vunpack.c.l.b16 %v778
          %v840 = vunpack.c.l.b16 %v779
          %v841 = vunpack.c.l.b16 %v780
          %v842 = vunpack.c.l.b16 %v781
          %v843 = vunpack.c.l.b16 %v782
          %v844 = vunpack.c.l.b16 %v783
          %v845 = vunpack.c.l.b16 %v784
          %v846 = vunpack.c.l.b16 %v785
          %v847 = vunpack.c.l.b16 %v786
          %v848 = vunpack.c.l.b16 %v787
          %v849 = vpack.c.b16 %v834, %v833
          %v850 = vpack.c.b16 %v836, %v835
          %v851 = vpack.c.b16 %v838, %v837
          %v852 = vpack.c.b16 %v840, %v839
          %v853 = vpack.c.b16 %v842, %v841
          %v854 = vpack.c.b16 %v844, %v843
          %v855 = vpack.c.b16 %v846, %v845
          %v856 = vpack.c.b16 %v848, %v847
          %865 = vmatprep.subr.bf16.mxu0 0
          %866 = vmatpush1.bf16.msra.mxu0 %v856
          %867 = vmatprep.subr.bf16.mxu0 0
          %868 = vmatpush1.bf16.msra.mxu0 %v855
          %869 = vmatprep.subr.bf16.mxu0 0
          %870 = vmatpush1.bf16.msra.mxu0 %v854
          %871 = vmatprep.subr.bf16.mxu0 0
          %872 = vmatpush1.bf16.msra.mxu0 %v853
          %873 = vmatprep.subr.bf16.mxu0 0
          %874 = vmatpush1.bf16.msra.mxu0 %v852
          %875 = vmatprep.subr.bf16.mxu0 0
          %876 = vmatpush1.bf16.msra.mxu0 %v851
          %877 = vmatprep.subr.bf16.mxu0 0
          %878 = vmatpush1.bf16.msra.mxu0 %v850
          %879 = vmatprep.subr.bf16.mxu0 0
          %880 = vmatpush1.bf16.msra.mxu0 %v849
          %881 = vmatprep.subr.bf16.mxu0 0
          %882 = vmatpush2.bf16.msra.mxu0 0
          %883 = vmatprep.subr.bf16.mxu0 0
          %884 = vmatpush2.bf16.msra.mxu0 0
          %885 = vmatprep.subr.bf16.mxu0 0
          %886 = vmatpush2.bf16.msra.mxu0 0
          %887 = vmatprep.subr.bf16.mxu0 0
          %888 = vmatpush2.bf16.msra.mxu0 0
          %889 = vmatprep.subr.bf16.mxu0 0
          %890 = vmatpush2.bf16.msra.mxu0 0
          %891 = vmatprep.subr.bf16.mxu0 0
          %892 = vmatpush2.bf16.msra.mxu0 0
          %893 = vmatprep.subr.bf16.mxu0 0
          %894 = vmatpush2.bf16.msra.mxu0 0
          %895 = vmatprep.subr.bf16.mxu0 0
          %896 = vmatpush2.bf16.msra.mxu0 0
          %897 = vmatprep.mubr.bf16.mxu0 0
          %898 = vmatmul.mubr.bf16.gmra.mxu0 %v804
          %v899 = vpop.f32.mrf.mxu0
          %v900 = vadd.f32 %v816, %v899
          %v901 = vpop.f32.mrf.mxu0
          %v902 = vpop.f32.mrf.mxu0
          %v903 = vadd.f32 %v816, %v902
          %v904 = vpop.f32.mrf.mxu0
          %905 = vmatprep.mubr.bf16.mxu0 0
          %906 = vmatmul.mubr.bf16.gmra.mxu0 %v805
          %v907 = vpop.f32.mrf.mxu0
          %v908 = vadd.f32 %v816, %v907
          %v909 = vpop.f32.mrf.mxu0
          %v910 = vpop.f32.mrf.mxu0
          %v911 = vadd.f32 %v816, %v910
          %v912 = vpop.f32.mrf.mxu0
          %913 = vmatprep.mubr.bf16.mxu0 0
          %914 = vmatmul.mubr.bf16.gmra.mxu0 %v806
          %v915 = vpop.f32.mrf.mxu0
          %v916 = vadd.f32 %v816, %v915
          %v917 = vpop.f32.mrf.mxu0
          %v918 = vpop.f32.mrf.mxu0
          %v919 = vadd.f32 %v816, %v918
          %v920 = vpop.f32.mrf.mxu0
          %921 = vmatprep.mubr.bf16.mxu0 0
          %922 = vmatmul.mubr.bf16.gmra.mxu0 %v807
          %v923 = vpop.f32.mrf.mxu0
          %v924 = vadd.f32 %v816, %v923
          %v925 = vpop.f32.mrf.mxu0
          %v926 = vpop.f32.mrf.mxu0
          %v927 = vadd.f32 %v816, %v926
          %v928 = vpop.f32.mrf.mxu0
          %929 = vmatprep.mubr.bf16.mxu0 0
          %930 = vmatmul.mubr.bf16.gmra.mxu0 %v808
          %v931 = vpop.f32.mrf.mxu0
          %v932 = vadd.f32 %v816, %v931
          %v933 = vpop.f32.mrf.mxu0
          %v934 = vpop.f32.mrf.mxu0
          %v935 = vadd.f32 %v816, %v934
          %v936 = vpop.f32.mrf.mxu0
          %937 = vmatprep.mubr.bf16.mxu0 0
          %938 = vmatmul.mubr.bf16.gmra.mxu0 %v809
          %v939 = vpop.f32.mrf.mxu0
          %v940 = vadd.f32 %v816, %v939
          %v941 = vpop.f32.mrf.mxu0
          %v942 = vpop.f32.mrf.mxu0
          %v943 = vadd.f32 %v816, %v942
          %v944 = vpop.f32.mrf.mxu0
          %945 = vmatprep.mubr.bf16.mxu0 0
          %946 = vmatmul.mubr.bf16.gmra.mxu0 %v810
          %v947 = vpop.f32.mrf.mxu0
          %v948 = vadd.f32 %v816, %v947
          %v949 = vpop.f32.mrf.mxu0
          %v950 = vpop.f32.mrf.mxu0
          %v951 = vadd.f32 %v816, %v950
          %v952 = vpop.f32.mrf.mxu0
          %953 = vmatprep.mubr.bf16.mxu0 0
          %954 = vmatmul.mubr.bf16.gmra.mxu0 %v811
          %v955 = vpop.f32.mrf.mxu0
          %v956 = vadd.f32 %v816, %v955
          %v957 = vpop.f32.mrf.mxu0
          %v958 = vpop.f32.mrf.mxu0
          %v959 = vadd.f32 %v816, %v958
          %v960 = vpop.f32.mrf.mxu0
          %961 = vdwg.mxu0
          %v962 = vmax.f32 %v900, 0.0
          %v963 = vmax.f32 %v903, 0.0
          %v964 = vmax.f32 %v908, 0.0
          %v965 = vmax.f32 %v911, 0.0
          %v966 = vmax.f32 %v916, 0.0
          %v967 = vmax.f32 %v919, 0.0
          %v968 = vmax.f32 %v924, 0.0
          %v969 = vmax.f32 %v927, 0.0
          %v970 = vmax.f32 %v932, 0.0
          %v971 = vmax.f32 %v935, 0.0
          %v972 = vmax.f32 %v940, 0.0
          %v973 = vmax.f32 %v943, 0.0
          %v974 = vmax.f32 %v948, 0.0
          %v975 = vmax.f32 %v951, 0.0
          %v976 = vmax.f32 %v956, 0.0
          %v977 = vmax.f32 %v959, 0.0
          %v978 = vpack.c.bf16 %v963, %v962
          %v979 = vpack.c.bf16 %v965, %v964
          %v980 = vpack.c.bf16 %v967, %v966
          %v981 = vpack.c.bf16 %v969, %v968
          %v982 = vpack.c.bf16 %v971, %v970
          %v983 = vpack.c.bf16 %v973, %v972
          %v984 = vpack.c.bf16 %v975, %v974
          %v985 = vpack.c.bf16 %v977, %v976
          %v986 = vld [vmem:[%s7 + $0x1] sm:$0x1]
          %v987 = vlaneseq
          %v988 = vshrl.u32 %v987, 7
          %v989 = vsub.s32 0, %v988
          %v990 = vrot.slane %v986, %v989
          %v1007 = vunpack.c.l.b16 %v788
          %v1008 = vunpack.c.l.b16 %v789
          %v1009 = vunpack.c.l.b16 %v790
          %v1010 = vunpack.c.l.b16 %v791
          %v1011 = vunpack.c.l.b16 %v792
          %v1012 = vunpack.c.l.b16 %v793
          %v1013 = vunpack.c.l.b16 %v794
          %v1014 = vunpack.c.l.b16 %v795
          %v1015 = vunpack.c.l.b16 %v796
          %v1016 = vunpack.c.l.b16 %v797
          %v1017 = vunpack.c.l.b16 %v798
          %v1018 = vunpack.c.l.b16 %v799
          %v1019 = vunpack.c.l.b16 %v800
          %v1020 = vunpack.c.l.b16 %v801
          %v1021 = vunpack.c.l.b16 %v802
          %v1022 = vunpack.c.l.b16 %v803
          %v1023 = vpack.c.b16 %v1008, %v1007
          %v1024 = vpack.c.b16 %v1010, %v1009
          %v1025 = vpack.c.b16 %v1012, %v1011
          %v1026 = vpack.c.b16 %v1014, %v1013
          %v1027 = vpack.c.b16 %v1016, %v1015
          %v1028 = vpack.c.b16 %v1018, %v1017
          %v1029 = vpack.c.b16 %v1020, %v1019
          %v1030 = vpack.c.b16 %v1022, %v1021
          %1039 = vmatprep.subr.bf16.mxu0 0
          %1040 = vmatpush1.bf16.msra.mxu0 %v1030
          %1041 = vmatprep.subr.bf16.mxu0 0
          %1042 = vmatpush1.bf16.msra.mxu0 %v1029
          %1043 = vmatprep.subr.bf16.mxu0 0
          %1044 = vmatpush1.bf16.msra.mxu0 %v1028
          %1045 = vmatprep.subr.bf16.mxu0 0
          %1046 = vmatpush1.bf16.msra.mxu0 %v1027
          %1047 = vmatprep.subr.bf16.mxu0 0
          %1048 = vmatpush1.bf16.msra.mxu0 %v1026
          %1049 = vmatprep.subr.bf16.mxu0 0
          %1050 = vmatpush1.bf16.msra.mxu0 %v1025
          %1051 = vmatprep.subr.bf16.mxu0 0
          %1052 = vmatpush1.bf16.msra.mxu0 %v1024
          %1053 = vmatprep.subr.bf16.mxu0 0
          %1054 = vmatpush1.bf16.msra.mxu0 %v1023
          %1055 = vmatprep.subr.bf16.mxu0 0
          %1056 = vmatpush2.bf16.msra.mxu0 0
          %1057 = vmatprep.subr.bf16.mxu0 0
          %1058 = vmatpush2.bf16.msra.mxu0 0
          %1059 = vmatprep.subr.bf16.mxu0 0
          %1060 = vmatpush2.bf16.msra.mxu0 0
          %1061 = vmatprep.subr.bf16.mxu0 0
          %1062 = vmatpush2.bf16.msra.mxu0 0
          %1063 = vmatprep.subr.bf16.mxu0 0
          %1064 = vmatpush2.bf16.msra.mxu0 0
          %1065 = vmatprep.subr.bf16.mxu0 0
          %1066 = vmatpush2.bf16.msra.mxu0 0
          %1067 = vmatprep.subr.bf16.mxu0 0
          %1068 = vmatpush2.bf16.msra.mxu0 0
          %1069 = vmatprep.subr.bf16.mxu0 0
          %1070 = vmatpush2.bf16.msra.mxu0 0
          %1071 = vmatprep.mubr.bf16.mxu0 0
          %1072 = vmatmul.mubr.bf16.gmra.mxu0 %v978
          %v1073 = vpop.f32.mrf.mxu0
          %v1074 = vadd.f32 %v990, %v1073
          %v1075 = vpop.f32.mrf.mxu0
          %v1076 = vpop.f32.mrf.mxu0
          %v1077 = vadd.f32 %v990, %v1076
          %v1078 = vpop.f32.mrf.mxu0
          %1079 = vmatprep.mubr.bf16.mxu0 0
          %1080 = vmatmul.mubr.bf16.gmra.mxu0 %v979
          %v1081 = vpop.f32.mrf.mxu0
          %v1082 = vadd.f32 %v990, %v1081
          %v1083 = vpop.f32.mrf.mxu0
          %v1084 = vpop.f32.mrf.mxu0
          %v1085 = vadd.f32 %v990, %v1084
          %v1086 = vpop.f32.mrf.mxu0
          %1087 = vmatprep.mubr.bf16.mxu0 0
          %1088 = vmatmul.mubr.bf16.gmra.mxu0 %v980
          %v1089 = vpop.f32.mrf.mxu0
          %v1090 = vadd.f32 %v990, %v1089
          %v1091 = vpop.f32.mrf.mxu0
          %v1092 = vpop.f32.mrf.mxu0
          %v1093 = vadd.f32 %v990, %v1092
          %v1094 = vpop.f32.mrf.mxu0
          %1095 = vmatprep.mubr.bf16.mxu0 0
          %1096 = vmatmul.mubr.bf16.gmra.mxu0 %v981
          %v1097 = vpop.f32.mrf.mxu0
          %v1098 = vadd.f32 %v990, %v1097
          %v1099 = vpop.f32.mrf.mxu0
          %v1100 = vpop.f32.mrf.mxu0
          %v1101 = vadd.f32 %v990, %v1100
          %v1102 = vpop.f32.mrf.mxu0
          %1103 = vmatprep.mubr.bf16.mxu0 0
          %1104 = vmatmul.mubr.bf16.gmra.mxu0 %v982
          %v1105 = vpop.f32.mrf.mxu0
          %v1106 = vadd.f32 %v990, %v1105
          %v1107 = vpop.f32.mrf.mxu0
          %v1108 = vpop.f32.mrf.mxu0
          %v1109 = vadd.f32 %v990, %v1108
          %v1110 = vpop.f32.mrf.mxu0
          %1111 = vmatprep.mubr.bf16.mxu0 0
          %1112 = vmatmul.mubr.bf16.gmra.mxu0 %v983
          %v1113 = vpop.f32.mrf.mxu0
          %v1114 = vadd.f32 %v990, %v1113
          %v1115 = vpop.f32.mrf.mxu0
          %v1116 = vpop.f32.mrf.mxu0
          %v1117 = vadd.f32 %v990, %v1116
          %v1118 = vpop.f32.mrf.mxu0
          %1119 = vmatprep.mubr.bf16.mxu0 0
          %1120 = vmatmul.mubr.bf16.gmra.mxu0 %v984
          %v1121 = vpop.f32.mrf.mxu0
          %v1122 = vadd.f32 %v990, %v1121
          %v1123 = vpop.f32.mrf.mxu0
          %v1124 = vpop.f32.mrf.mxu0
          %v1125 = vadd.f32 %v990, %v1124
          %v1126 = vpop.f32.mrf.mxu0
          %1127 = vmatprep.mubr.bf16.mxu0 0
          %1128 = vmatmul.mubr.bf16.gmra.mxu0 %v985
          %v1129 = vpop.f32.mrf.mxu0
          %v1130 = vadd.f32 %v990, %v1129
          %v1131 = vpop.f32.mrf.mxu0
          %v1132 = vpop.f32.mrf.mxu0
          %v1133 = vadd.f32 %v990, %v1132
          %v1134 = vpop.f32.mrf.mxu0
          %1135 = vdwg.mxu0
          %v1136 = vmax.f32 %v1074, 0.0
          %v1137 = vmax.f32 %v1077, 0.0
          %v1138 = vmax.f32 %v1082, 0.0
          %v1139 = vmax.f32 %v1085, 0.0
          %v1140 = vmax.f32 %v1090, 0.0
          %v1141 = vmax.f32 %v1093, 0.0
          %v1142 = vmax.f32 %v1098, 0.0
          %v1143 = vmax.f32 %v1101, 0.0
          %v1144 = vmax.f32 %v1106, 0.0
          %v1145 = vmax.f32 %v1109, 0.0
          %v1146 = vmax.f32 %v1114, 0.0
          %v1147 = vmax.f32 %v1117, 0.0
          %v1148 = vmax.f32 %v1122, 0.0
          %v1149 = vmax.f32 %v1125, 0.0
          %v1150 = vmax.f32 %v1130, 0.0
          %v1151 = vmax.f32 %v1133, 0.0
          %1152 = vst [vmem:[%s424] sm:$0xff] %v1136
          %1153 = vst [vmem:[%s424 + $0x8] sm:$0xff] %v1137
          %1154 = vst [vmem:[%s424 + $0x10] sm:$0xff] %v1138
          %1155 = vst [vmem:[%s424 + $0x18] sm:$0xff] %v1139
          %1156 = vst [vmem:[%s424 + $0x20] sm:$0xff] %v1140
          %1157 = vst [vmem:[%s424 + $0x28] sm:$0xff] %v1141
          %1158 = vst [vmem:[%s424 + $0x30] sm:$0xff] %v1142
          %1159 = vst [vmem:[%s424 + $0x38] sm:$0xff] %v1143
          %1160 = vst [vmem:[%s424 + $0x40] sm:$0xff] %v1144
          %1161 = vst [vmem:[%s424 + $0x48] sm:$0xff] %v1145
          %1162 = vst [vmem:[%s424 + $0x50] sm:$0xff] %v1146
          %1163 = vst [vmem:[%s424 + $0x58] sm:$0xff] %v1147
          %1164 = vst [vmem:[%s424 + $0x60] sm:$0xff] %v1148
          %1165 = vst [vmem:[%s424 + $0x68] sm:$0xff] %v1149
          %1166 = vst [vmem:[%s424 + $0x70] sm:$0xff] %v1150
          %1167 = vst [vmem:[%s424 + $0x78] sm:$0xff] %v1151
          %v1168 = vld [vmem:[#allocation3] sm:$0x1]
          %v1169 = vadd.f32 %v1136, %v1137
          %v1170 = vadd.f32 %v1169, %v1138
          %v1171 = vadd.f32 %v1170, %v1139
          %v1172 = vadd.f32 %v1171, %v1140
          %v1173 = vadd.f32 %v1172, %v1141
          %v1174 = vadd.f32 %v1173, %v1142
          %v1175 = vadd.f32 %v1174, %v1143
          %v1176 = vadd.f32 %v1175, %v1144
          %v1177 = vadd.f32 %v1176, %v1145
          %v1178 = vadd.f32 %v1177, %v1146
          %v1179 = vadd.f32 %v1178, %v1147
          %v1180 = vadd.f32 %v1179, %v1148
          %v1181 = vadd.f32 %v1180, %v1149
          %v1182 = vadd.f32 %v1181, %v1150
          %v1183 = vadd.f32 %v1182, %v1151
          %v1184 = vrot.slane %v1183, 4
          %v1185 = vadd.f32 %v1183, %v1184
          %v1186 = vrot.slane %v1185, 2
          %v1187 = vadd.f32 %v1185, %v1186
          %v1188 = vrot.slane %v1187, 1
          %v1189 = vadd.f32 %v1187, %v1188
          %v1190 = vadd.f32 %v1168, %v1189
          %1191 = vst [vmem:[#allocation3] sm:$0x1] %v1190
          %v1192 = vld [vmem:[#allocation3 + $0x1] sm:$0x1]
          %v1193 = vmul.f32 %v1136, %v1136
          %v1194 = vmul.f32 %v1137, %v1137
          %v1195 = vmul.f32 %v1138, %v1138
          %v1196 = vmul.f32 %v1139, %v1139
          %v1197 = vmul.f32 %v1140, %v1140
          %v1198 = vmul.f32 %v1141, %v1141
          %v1199 = vmul.f32 %v1142, %v1142
          %v1200 = vmul.f32 %v1143, %v1143
          %v1201 = vmul.f32 %v1144, %v1144
          %v1202 = vmul.f32 %v1145, %v1145
          %v1203 = vmul.f32 %v1146, %v1146
          %v1204 = vmul.f32 %v1147, %v1147
          %v1205 = vmul.f32 %v1148, %v1148
          %v1206 = vmul.f32 %v1149, %v1149
          %v1207 = vmul.f32 %v1150, %v1150
          %v1208 = vmul.f32 %v1151, %v1151
          %v1209 = vadd.f32 %v1193, %v1194
          %v1210 = vadd.f32 %v1209, %v1195
          %v1211 = vadd.f32 %v1210, %v1196
          %v1212 = vadd.f32 %v1211, %v1197
          %v1213 = vadd.f32 %v1212, %v1198
          %v1214 = vadd.f32 %v1213, %v1199
          %v1215 = vadd.f32 %v1214, %v1200
          %v1216 = vadd.f32 %v1215, %v1201
          %v1217 = vadd.f32 %v1216, %v1202
          %v1218 = vadd.f32 %v1217, %v1203
          %v1219 = vadd.f32 %v1218, %v1204
          %v1220 = vadd.f32 %v1219, %v1205
          %v1221 = vadd.f32 %v1220, %v1206
          %v1222 = vadd.f32 %v1221, %v1207
          %v1223 = vadd.f32 %v1222, %v1208
          %v1224 = vrot.slane %v1223, 4
          %v1225 = vadd.f32 %v1223, %v1224
          %v1226 = vrot.slane %v1225, 2
          %v1227 = vadd.f32 %v1225, %v1226
          %v1228 = vrot.slane %v1227, 1
          %v1229 = vadd.f32 %v1227, %v1228
          %v1230 = vadd.f32 %v1192, %v1229
          %1231 = vst [vmem:[#allocation3 + $0x1] sm:$0x1] %v1230
        $region76: #{tpu_custom_call.1} parent=43 // pred_fallthru
          _
        %p1232 = scmp.eq.s32.totalorder %s44, 1
        %p1233 = pnand %p1232, %p752
        %p1234 = pneg %p1233
        // Predicated region
        $region77: #{tpu_custom_call.1} parent=43 // pred_check
          _
        $region78: #{tpu_custom_call.1} parent=43 // pred_check_branch
          %1236 = sbr.rel (%p1233) target = $region80
        $region79: #{tpu_custom_call.1} parent=43 // pred_region
          %v1237 = vld [vmem:[#allocation3] sm:$0x1]
          %v1238 = vld [vmem:[#allocation3 + $0x1] sm:$0x1]
          %v1239 = vld [vmem:[%s7 + $0x2] sm:$0x1]
          %v1240 = vld [vmem:[%s7 + $0x3] sm:$0x1]
          %v1241 = vrcp.pop 256.0
          %v1242 = vmul.f32 %v1237, %v1241
          %v1243 = vmul.f32 %v1238, %v1241
          %v1244 = vmul.f32 %v1242, %v1242
          %v1245 = vsub.f32 %v1243, %v1244
          %v1246 = vadd.f32 %v1245, 1e-05
          %v1247 = vrsqrt.pop %v1246
          %v1248 = vmul.f32 %v1239, %v1247
          %v1249 = vmul.f32 %v1242, %v1248
          %v1250 = vsub.f32 %v1240, %v1249
          %1251 = vst [vmem:[#allocation16] sm:$0x1] %v1248
          %1252 = vst [vmem:[#allocation16 + $0x1] sm:$0x1] %v1250
        $region80: #{tpu_custom_call.1} parent=43 // pred_fallthru
          _
        %s1253 = sand.u32 %s222, 1
        %s1254 = scalar_lea.sflag [#allocation9], %s1253
        %s1255 = sand.u32 %s222, 1
        %s1256 = smul.addr %s1255, 128
        %s1257 = scalar_lea.vmem [#allocation15], %s1256
        // Predicated region
        $region81: #{tpu_custom_call.1} parent=43 // pred_check
          %p1258 = pneg %p232
        $region82: #{tpu_custom_call.1} parent=43 // pred_check_branch
          %1260 = sbr.rel (%p1258) target = $region84
        $region83: #{tpu_custom_call.1} parent=43 // pred_region
          %s1261 = smul.u32 16, %s44
          %s1263 = ssub.s32 2048, 2048
          %1264 = vsyncadd %s1254, %s1263
          %s1265 = smul.addr %s1261, 128
          %s1266 = scalar_lea.hbm %s8, %s1265
          %s1267 = sshll.u32 %s1257, 4
          %s1268 = int_to_ptr.vmem [resolvable:$true] %s1267
          %1273 = dma.vmem_to_hbm [thread:$0]  %s1268, 2048, %s1266, %s1254, 128, 128, 8
        $region84: #{tpu_custom_call.1} parent=43 // pred_fallthru
          _
        // Predicated region
        $region85: #{tpu_custom_call.1} parent=43 // pred_check
          %p1274 = pneg %p253
        $region86: #{tpu_custom_call.1} parent=43 // pred_check_branch
          %1276 = sbr.rel (%p1274) target = $region88
        $region87: #{tpu_custom_call.1} parent=43 // pred_region
          %s1278 = ssub.s32 32, 32
          %1279 = vsyncadd [#allocation17], %s1278
          %s1281 = sshll.u32 [#allocation16], 4
          %s1282 = int_to_ptr.vmem [resolvable:$true] %s1281
          %1284 = dma.vmem_to_hbm [thread:$0]  %s1282, 32, %s9, [#allocation17]
        $region88: #{tpu_custom_call.1} parent=43 // pred_fallthru
          _
        // Predicated region
        $region89: #{tpu_custom_call.1} parent=43 // pred_check
          %p1285 = pneg %p253
        $region90: #{tpu_custom_call.1} parent=43 // pred_check_branch
          %1287 = sbr.rel (%p1285) target = $region92
        $region91: #{tpu_custom_call.1} parent=43 // pred_region
          %1288 = dma.done [#allocation17], 32
        $region92: #{tpu_custom_call.1} parent=43 // pred_fallthru
          _
      $region44: #{tpu_custom_call.1} parent=5 // pred_fallthru
        _
      %p1289 = scmp.le.s32.totalorder 2, %s35
      // Predicated region
      $region93: #{tpu_custom_call.1} parent=5 // pred_check
        %p1290 = pneg %p1289
      $region94: #{tpu_custom_call.1} parent=5 // pred_check_branch
        %1292 = sbr.rel (%p1290) target = $region96
      $region95: #{tpu_custom_call.1} parent=5 // pred_region
        %s1293 = ssub.s32 %s35, 2
        // Predicated region
        $region97: #{tpu_custom_call.1} parent=95 // pred_check
          %p1294 = pneg %p238
        $region98: #{tpu_custom_call.1} parent=95 // pred_check_branch
          %1296 = sbr.rel (%p1294) target = $region100
        $region99: #{tpu_custom_call.1} parent=95 // pred_region
          %s1297 = sand.u32 %s223, 1
          %s1298 = scalar_lea.sflag [#allocation9], %s1297
          %s1299 = sand.u32 %s223, 1
          %s1300 = smul.addr %s1299, 128
          %s1301 = scalar_lea.vmem [#allocation15], %s1300
          %1302 = dma.done %s1298, 2048
        $region100: #{tpu_custom_call.1} parent=95 // pred_fallthru
          _
      $region96: #{tpu_custom_call.1} parent=5 // pred_fallthru
        _
    $region6: #{tpu_custom_call.1} parent=1 // loop_footer
      %s39 = sadd.s32 1, %s35
    $region7: #{tpu_custom_call.1} parent=1 // loop_footer_branch
      %34 = sbr.rel target = $region3
    $region8: #{tpu_custom_call.1} parent=1 // loop_exit
      _
    %1303 = vsyncpa [#allocation8], 1
    %s1304 = scalar_lea.sflag [#allocation8], 1
    %1305 = vsyncpa %s1304, 1
    %1306 = vsyncpa [#allocation11], 1
    %s1307 = scalar_lea.sflag [#allocation11], 1
    %1308 = vsyncpa %s1307, 1
    %1309 = vsyncpa [#allocation14], 1
    %1310 = vsyncpa [#allocation9], 1
    %s1311 = scalar_lea.sflag [#allocation9], 1
    %1312 = vsyncpa %s1311, 1
    %1313 = vsyncpa [#allocation17], 1

</llo_original>
